<compile_context>
chip_gen: v5e
topology: v5e:2x2
jax: 0.10.0
libtpu: 0.0.40
codegen_flags: <defaults>
</compile_context>

<pallas_src>
import math
import functools

import numpy as np
import jax
import jax.numpy as jnp
from jax import lax
from jax.experimental import pallas as pl
from jax.experimental.pallas import tpu as pltpu


LANES = 128  # lane width; the packed (x * CS + c) axis is zero-padded to this


# ----------------------------- fused kernel ---------------------------------

def _mainnet_kernel(x_ref, w_ref, b_ref, o_ref, *, num_blocks):
    # x_ref: (1, H, LANES) f32    packed input,  lane = x*CS + c (zero padded)
    # w_ref: (3*L, LANES, LANES) bf16  banded weights; layer li -> rows [3li, 3li+3)
    # b_ref: (L, 1, LANES) f32    packed biases (bias[x*CS + co] = b[co])
    # o_ref: (1, H, LANES) f32    packed output
    f32 = jnp.float32
    bf16 = jnp.bfloat16

    def conv(act, li, relu):
        """3x3 SAME conv in packed layout: 3 MXU matmuls (one per ky)."""
        zrow = jnp.zeros((1, act.shape[1]), f32)
        # row y of `up` holds act[y-1]; row y of `dn` holds act[y+1]; the
        # boundary rows are zero (SAME padding in y).  x padding lives in the
        # banded weight matrices, so no masks and no padded slab are needed.
        up = jnp.concatenate([zrow, act[:-1]], axis=0).astype(bf16)
        dn = jnp.concatenate([act[1:], zrow], axis=0).astype(bf16)
        a = act.astype(bf16)
        y = jnp.dot(up, w_ref[3 * li + 0], preferred_element_type=f32)
        y = y + jnp.dot(a, w_ref[3 * li + 1], preferred_element_type=f32)
        y = y + jnp.dot(dn, w_ref[3 * li + 2], preferred_element_type=f32)
        y = y + b_ref[li]                       # (1, LANES) broadcast, f32
        if relu:
            y = jnp.maximum(y, 0.0)
        return y

    # ---- head: conv3x3(n_colors -> num_channels), no bias, no act ----------
    head = conv(x_ref[0], 0, relu=False)

    # ---- body: ResBlocks (conv+ReLU+conv, residual add, res_scale = 1) -----
    def block(i, out):
        li = 1 + 2 * i                          # dynamic layer index
        res = conv(out, li, relu=True)
        res = conv(res, li + 1, relu=False)
        return res + out

    out = lax.fori_loop(0, num_blocks, block, head)

    # ---- tail conv (Upsampler(scale=1) is an empty Sequential -> identity) -
    out = conv(out, 1 + 2 * num_blocks, relu=False)

    # ---- end conv on (output + head_f), residual add fused in vregs --------
    out = conv(out + head, 2 + 2 * num_blocks, relu=False)

    o_ref[0] = out.astype(o_ref.dtype)


# --------------------------- host-side packing ------------------------------

def _pack_layer_w(w, W, CS, lanes=LANES):
    """HWIO (3,3,cin,cout) -> (3, lanes, lanes) banded matrices, one per ky.

    M_ky[x_in*CS + ci, x_out*CS + co] = w[ky, x_in - x_out + 1, ci, co]
    when |x_in - x_out| <= 1 and both are valid image columns, else 0
    (i.e. SAME x-padding is baked into the matrix)."""
    kh, kw, cin, cout = w.shape
    wp = jnp.pad(w.astype(jnp.float32),
                 ((0, 0), (0, 0), (0, CS - cin), (0, CS - cout)))  # (3,3,CS,CS)
    xi = np.arange(W)[:, None]
    xo = np.arange(W)[None, :]
    # S[dx, x_in, x_out] = 1 iff x_in == x_out + dx - 1
    S = np.stack([(xi == xo + d - 1) for d in range(3)]).astype(np.float32)
    m = jnp.einsum('dab,edio->eaibo', jnp.asarray(S), wp)   # (3, W, CS, W, CS)
    m = m.reshape(3, W * CS, W * CS)
    m = jnp.pad(m, ((0, 0), (0, lanes - W * CS), (0, lanes - W * CS)))
    return m.astype(jnp.bfloat16)


def _pack_layer_b(b, W, CS, lanes=LANES):
    cout = b.shape[0]
    bp = jnp.pad(b.astype(jnp.float32), (0, CS - cout))      # (CS,)
    bp = jnp.tile(bp, W)                                      # (W*CS,)
    bp = jnp.pad(bp, (0, lanes - W * CS))
    return bp.reshape(1, lanes)


# ---------------- parameter init (deterministic, mirrors default_conv) ------

def _kaiming_conv(key, cin, cout, kh=3, kw=3, init_scale=0.1):
    # kaiming_normal_(a=0, mode='fan_in') => std = sqrt(2 / fan_in), then *0.1
    fan_in = cin * kh * kw
    std = math.sqrt(2.0 / fan_in)
    return jax.random.normal(key, (kh, kw, cin, cout), jnp.float32) * std * init_scale


def init_mainnet_params(key, n_colors, out_nc, num_channels, num_blocks):
    keys = jax.random.split(key, 3 + 2 * num_blocks)
    params = {}
    params["head_w"] = _kaiming_conv(keys[0], n_colors, num_channels)
    body = []
    for i in range(num_blocks):
        w1 = _kaiming_conv(keys[1 + 2 * i], num_channels, num_channels)
        w2 = _kaiming_conv(keys[2 + 2 * i], num_channels, num_channels)
        # ResBlock convs have bias=True, but default_conv zeroes the bias.
        b1 = jnp.zeros((num_channels,), jnp.float32)
        b2 = jnp.zeros((num_channels,), jnp.float32)
        body.append((w1, b1, w2, b2))
    params["body"] = body
    params["tail_w"] = _kaiming_conv(keys[1 + 2 * num_blocks], num_channels, num_channels)
    params["end_w"] = _kaiming_conv(keys[2 + 2 * num_blocks], num_channels, out_nc)
    return params


# ---------------- MainNet forward (task_type='sr', upscale=1) ---------------

def mainnet_forward(params, x_nchw):
    B, n_colors, H, W = x_nchw.shape
    num_blocks = len(params["body"])
    num_channels = params["head_w"].shape[-1]
    out_nc = params["end_w"].shape[-1]

    CS = max(n_colors, num_channels, out_nc)    # per-pixel channel slot width
    assert W * CS <= LANES, (
        f"packed width W*CS={W*CS} > {LANES}: needs x-strip tiling (TODO(synk))")

    # Stack all conv weights/biases.  Layer order: head, (blk convs...), tail, end.
    w_list = [params["head_w"]]
    b_list = [jnp.zeros((num_channels,), jnp.float32)]
    for (w1, b1, w2, b2) in params["body"]:
        w_list += [w1, w2]
        b_list += [b1, b2]
    w_list += [params["tail_w"], params["end_w"]]
    b_list += [jnp.zeros((num_channels,), jnp.float32),
               jnp.zeros((out_nc,), jnp.float32)]
    L = len(w_list)

    w_stack = jnp.concatenate([_pack_layer_w(w, W, CS) for w in w_list], axis=0)
    b_stack = jnp.stack([_pack_layer_b(b, W, CS) for b in b_list])
    # w_stack: (3L, 128, 128) bf16;  b_stack: (L, 1, 128) f32

    # Input NCHW -> packed (B, H, W*CS) lane-dense slab, channels zero-padded.
    x = jnp.transpose(x_nchw, (0, 2, 3, 1)).astype(jnp.float32)     # NHWC
    x = jnp.pad(x, ((0, 0), (0, 0), (0, 0), (0, CS - n_colors)))
    x = x.reshape(B, H, W * CS)
    x = jnp.pad(x, ((0, 0), (0, 0), (0, LANES - W * CS)))

    kernel = functools.partial(_mainnet_kernel, num_blocks=num_blocks)

    # Explicit VMEM budget (double-buffered blocks) + cost hint (review item 5).
    in_block = H * LANES * 4
    out_block = H * LANES * 4
    w_bytes = 3 * L * LANES * LANES * 2
    b_bytes = L * LANES * 4
    vmem_limit = 2 * (in_block + out_block + w_bytes + b_bytes) + (8 << 20)
    flops = 2 * B * L * 3 * H * LANES * LANES
    bytes_accessed = 2 * B * H * LANES * 4 + w_bytes + b_bytes

    out = pl.pallas_call(
        kernel,
        out_shape=jax.ShapeDtypeStruct((B, H, LANES), jnp.float32),
        grid=(B,),
        in_specs=[
            pl.BlockSpec((1, H, LANES), lambda i: (i, 0, 0)),
            # constant index_map: weights/biases staged into VMEM once, reused
            pl.BlockSpec((3 * L, LANES, LANES), lambda i: (0, 0, 0)),
            pl.BlockSpec((L, 1, LANES), lambda i: (0, 0, 0)),
        ],
        out_specs=pl.BlockSpec((1, H, LANES), lambda i: (i, 0, 0)),
        compiler_params=pltpu.CompilerParams(
            dimension_semantics=("parallel",),
            vmem_limit_bytes=int(vmem_limit)),
        cost_estimate=pl.CostEstimate(
            flops=int(flops), transcendentals=0,
            bytes_accessed=int(bytes_accessed)),
    )(x, w_stack, b_stack)

    # Unpack lanes -> (B, out_nc, H, W).
    out = out[:, :, :W * CS].reshape(B, H, W, CS)[..., :out_nc]
    return jnp.transpose(out, (0, 3, 1, 2))


# ---------------- pure-JAX reference (for correctness check) ----------------

def _conv3x3_ref(x, w, b=None, relu=False):
    y = jax.lax.conv_general_dilated(
        x, w, window_strides=(1, 1), padding="SAME",
        dimension_numbers=("NHWC", "HWIO", "NHWC"))
    if b is not None:
        y = y + b
    if relu:
        y = jnp.maximum(y, 0.0)
    return y


def mainnet_forward_ref(params, x_nchw):
    x = jnp.transpose(x_nchw, (0, 2, 3, 1))
    out = _conv3x3_ref(x, params["head_w"])
    head_f = out
    for (w1, b1, w2, b2) in params["body"]:
        res = _conv3x3_ref(out, w1, b1, relu=True)
        res = _conv3x3_ref(res, w2, b2)
        out = res + out
    out = _conv3x3_ref(out, params["tail_w"])
    out = _conv3x3_ref(out + head_f, params["end_w"])
    return jnp.transpose(out, (0, 3, 1, 2))


if __name__ == "__main__":
    key = jax.random.PRNGKey(0)
    kx, kp = jax.random.split(key)

    n_colors, out_nc = 3, 3
    num_channels, num_blocks = 8, 2
    B, H, W = 2, 16, 16

    x = jax.random.normal(kx, (B, n_colors, H, W), jnp.float32)   # NCHW input
    params = init_mainnet_params(kp, n_colors, out_nc, num_channels, num_blocks)

    y = jax.jit(mainnet_forward)(params, x)
    y = jax.block_until_ready(y)

    assert y.shape == (B, out_nc, H, W), y.shape
    y_ref = mainnet_forward_ref(params, x)
    assert jnp.allclose(y, y_ref, atol=1e-2, rtol=1e-2), \
        float(jnp.max(jnp.abs(y - y_ref)))

    print("KERNEL_OK")
</pallas_src>

<mosaic_0001>
module attributes {stable_mosaic.version = 11 : i64} {
  func.func @_mainnet_kernel(%arg0: i32, %arg1: memref<1x16x128xf32, #tpu.memory_space<vmem>>, %arg2: memref<21x128x128xbf16, #tpu.memory_space<vmem>>, %arg3: memref<7x1x128xf32, #tpu.memory_space<vmem>>, %arg4: memref<1x16x128xf32, #tpu.memory_space<vmem>>) attributes {dimension_semantics = [#tpu.dimension_semantics<parallel>], iteration_bounds = array<i64: 2>, scalar_prefetch = 0 : i64, scratch_operands = 0 : i64, tpu.core_type = #tpu.core_type<tc>, window_params = [{transform_indices = @transform_0, window_bounds = array<i64: 1, 16, 128>}, {pipeline_mode = #tpu.pipeline_mode<synchronous>, transform_indices = @transform_1, window_bounds = array<i64: 21, 128, 128>}, {pipeline_mode = #tpu.pipeline_mode<synchronous>, transform_indices = @transform_2, window_bounds = array<i64: 7, 1, 128>}, {transform_indices = @transform_3, window_bounds = array<i64: 1, 16, 128>}]} {
    %c0 = arith.constant 0 : index
    %c0_0 = arith.constant 0 : index
    %c0_1 = arith.constant 0 : index
    %0 = vector.load %arg1[%c0, %c0_0, %c0_1] : memref<1x16x128xf32, #tpu.memory_space<vmem>>, vector<1x16x128xf32>
    %1 = vector.shape_cast %0 : vector<1x16x128xf32> to vector<16x128xf32>
    %cst = arith.constant 0.000000e+00 : f32
    %2 = vector.broadcast %cst : f32 to vector<1x128xf32>
    %3 = vector.extract_strided_slice %1 {offsets = [0, 0], sizes = [15, 128], strides = [1, 1]} : vector<16x128xf32> to vector<15x128xf32>
    %4 = tpu.concatenate %2, %3 in 0 : vector<1x128xf32>, vector<15x128xf32> -> vector<16x128xf32>
    %5 = arith.truncf %4 : vector<16x128xf32> to vector<16x128xbf16>
    %6 = vector.extract_strided_slice %1 {offsets = [1, 0], sizes = [15, 128], strides = [1, 1]} : vector<16x128xf32> to vector<15x128xf32>
    %7 = tpu.concatenate %6, %2 in 0 : vector<15x128xf32>, vector<1x128xf32> -> vector<16x128xf32>
    %8 = arith.truncf %7 : vector<16x128xf32> to vector<16x128xbf16>
    %9 = arith.truncf %1 : vector<16x128xf32> to vector<16x128xbf16>
    %c0_2 = arith.constant 0 : index
    %c0_3 = arith.constant 0 : index
    %c0_4 = arith.constant 0 : index
    %10 = vector.load %arg2[%c0_2, %c0_3, %c0_4] : memref<21x128x128xbf16, #tpu.memory_space<vmem>>, vector<1x128x128xbf16>
    %11 = vector.shape_cast %10 : vector<1x128x128xbf16> to vector<128x128xbf16>
    %cst_5 = arith.constant dense<0.000000e+00> : vector<16x128xf32>
    %12 = tpu.matmul %5, %11, %cst_5 {dimension_numbers = #tpu.dot_dimension_numbers<[1], [0], [0], [1], [0, 0, 1, 1], [], []>} : vector<16x128xbf16>, vector<128x128xbf16>, vector<16x128xf32> -> vector<16x128xf32>
    %c1 = arith.constant 1 : index
    %c0_6 = arith.constant 0 : index
    %c0_7 = arith.constant 0 : index
    %13 = vector.load %arg2[%c1, %c0_6, %c0_7] : memref<21x128x128xbf16, #tpu.memory_space<vmem>>, vector<1x128x128xbf16>
    %14 = vector.shape_cast %13 : vector<1x128x128xbf16> to vector<128x128xbf16>
    %cst_8 = arith.constant dense<0.000000e+00> : vector<16x128xf32>
    %15 = tpu.matmul %9, %14, %cst_8 {dimension_numbers = #tpu.dot_dimension_numbers<[1], [0], [0], [1], [0, 0, 1, 1], [], []>} : vector<16x128xbf16>, vector<128x128xbf16>, vector<16x128xf32> -> vector<16x128xf32>
    %16 = arith.addf %12, %15 : vector<16x128xf32>
    %c2 = arith.constant 2 : index
    %c0_9 = arith.constant 0 : index
    %c0_10 = arith.constant 0 : index
    %17 = vector.load %arg2[%c2, %c0_9, %c0_10] : memref<21x128x128xbf16, #tpu.memory_space<vmem>>, vector<1x128x128xbf16>
    %18 = vector.shape_cast %17 : vector<1x128x128xbf16> to vector<128x128xbf16>
    %cst_11 = arith.constant dense<0.000000e+00> : vector<16x128xf32>
    %19 = tpu.matmul %8, %18, %cst_11 {dimension_numbers = #tpu.dot_dimension_numbers<[1], [0], [0], [1], [0, 0, 1, 1], [], []>} : vector<16x128xbf16>, vector<128x128xbf16>, vector<16x128xf32> -> vector<16x128xf32>
    %20 = arith.addf %16, %19 : vector<16x128xf32>
    %c0_12 = arith.constant 0 : index
    %c0_13 = arith.constant 0 : index
    %c0_14 = arith.constant 0 : index
    %21 = vector.load %arg3[%c0_12, %c0_13, %c0_14] : memref<7x1x128xf32, #tpu.memory_space<vmem>>, vector<1x1x128xf32>
    %22 = vector.shape_cast %21 : vector<1x1x128xf32> to vector<1x128xf32>
    %23 = vector.broadcast %22 : vector<1x128xf32> to vector<16x128xf32>
    %24 = arith.addf %20, %23 : vector<16x128xf32>
    %c0_i32 = arith.constant 0 : i32
    %c2_i32 = arith.constant 2 : i32
    %25 = arith.addi %c0_i32, %c2_i32 : i32
    %c1_i32 = arith.constant 1 : i32
    %26 = scf.for %arg5 = %c0_i32 to %25 step %c1_i32 iter_args(%arg6 = %24) -> (vector<16x128xf32>)  : i32 {
      %c2_i32_43 = arith.constant 2 : i32
      %77 = arith.muli %c2_i32_43, %arg5 : i32
      %c1_i32_44 = arith.constant 1 : i32
      %78 = arith.addi %c1_i32_44, %77 : i32
      %cst_45 = arith.constant 0.000000e+00 : f32
      %79 = vector.broadcast %cst_45 : f32 to vector<1x128xf32>
      %80 = vector.extract_strided_slice %arg6 {offsets = [0, 0], sizes = [15, 128], strides = [1, 1]} : vector<16x128xf32> to vector<15x128xf32>
      %81 = tpu.concatenate %79, %80 in 0 : vector<1x128xf32>, vector<15x128xf32> -> vector<16x128xf32>
      %82 = arith.truncf %81 : vector<16x128xf32> to vector<16x128xbf16>
      %83 = vector.extract_strided_slice %arg6 {offsets = [1, 0], sizes = [15, 128], strides = [1, 1]} : vector<16x128xf32> to vector<15x128xf32>
      %84 = tpu.concatenate %83, %79 in 0 : vector<15x128xf32>, vector<1x128xf32> -> vector<16x128xf32>
      %85 = arith.truncf %84 : vector<16x128xf32> to vector<16x128xbf16>
      %86 = arith.truncf %arg6 : vector<16x128xf32> to vector<16x128xbf16>
      %c3_i32 = arith.constant 3 : i32
      %87 = arith.muli %c3_i32, %78 : i32
      %c0_i32_46 = arith.constant 0 : i32
      %88 = arith.addi %87, %c0_i32_46 : i32
      %89 = arith.index_cast %88 : i32 to index
      %c0_47 = arith.constant 0 : index
      %c0_48 = arith.constant 0 : index
      %90 = vector.load %arg2[%89, %c0_47, %c0_48] : memref<21x128x128xbf16, #tpu.memory_space<vmem>>, vector<1x128x128xbf16>
      %91 = vector.shape_cast %90 : vector<1x128x128xbf16> to vector<128x128xbf16>
      %cst_49 = arith.constant dense<0.000000e+00> : vector<16x128xf32>
      %92 = tpu.matmul %82, %91, %cst_49 {dimension_numbers = #tpu.dot_dimension_numbers<[1], [0], [0], [1], [0, 0, 1, 1], [], []>} : vector<16x128xbf16>, vector<128x128xbf16>, vector<16x128xf32> -> vector<16x128xf32>
      %c3_i32_50 = arith.constant 3 : i32
      %93 = arith.muli %c3_i32_50, %78 : i32
      %c1_i32_51 = arith.constant 1 : i32
      %94 = arith.addi %93, %c1_i32_51 : i32
      %95 = arith.index_cast %94 : i32 to index
      %c0_52 = arith.constant 0 : index
      %c0_53 = arith.constant 0 : index
      %96 = vector.load %arg2[%95, %c0_52, %c0_53] : memref<21x128x128xbf16, #tpu.memory_space<vmem>>, vector<1x128x128xbf16>
      %97 = vector.shape_cast %96 : vector<1x128x128xbf16> to vector<128x128xbf16>
      %cst_54 = arith.constant dense<0.000000e+00> : vector<16x128xf32>
      %98 = tpu.matmul %86, %97, %cst_54 {dimension_numbers = #tpu.dot_dimension_numbers<[1], [0], [0], [1], [0, 0, 1, 1], [], []>} : vector<16x128xbf16>, vector<128x128xbf16>, vector<16x128xf32> -> vector<16x128xf32>
      %99 = arith.addf %92, %98 : vector<16x128xf32>
      %c3_i32_55 = arith.constant 3 : i32
      %100 = arith.muli %c3_i32_55, %78 : i32
      %c2_i32_56 = arith.constant 2 : i32
      %101 = arith.addi %100, %c2_i32_56 : i32
      %102 = arith.index_cast %101 : i32 to index
      %c0_57 = arith.constant 0 : index
      %c0_58 = arith.constant 0 : index
      %103 = vector.load %arg2[%102, %c0_57, %c0_58] : memref<21x128x128xbf16, #tpu.memory_space<vmem>>, vector<1x128x128xbf16>
      %104 = vector.shape_cast %103 : vector<1x128x128xbf16> to vector<128x128xbf16>
      %cst_59 = arith.constant dense<0.000000e+00> : vector<16x128xf32>
      %105 = tpu.matmul %85, %104, %cst_59 {dimension_numbers = #tpu.dot_dimension_numbers<[1], [0], [0], [1], [0, 0, 1, 1], [], []>} : vector<16x128xbf16>, vector<128x128xbf16>, vector<16x128xf32> -> vector<16x128xf32>
      %106 = arith.addf %99, %105 : vector<16x128xf32>
      %107 = arith.index_cast %78 : i32 to index
      %c0_60 = arith.constant 0 : index
      %c0_61 = arith.constant 0 : index
      %108 = vector.load %arg3[%107, %c0_60, %c0_61] : memref<7x1x128xf32, #tpu.memory_space<vmem>>, vector<1x1x128xf32>
      %109 = vector.shape_cast %108 : vector<1x1x128xf32> to vector<1x128xf32>
      %110 = vector.broadcast %109 : vector<1x128xf32> to vector<16x128xf32>
      %111 = arith.addf %106, %110 : vector<16x128xf32>
      %cst_62 = arith.constant 0.000000e+00 : f32
      %112 = vector.broadcast %cst_62 : f32 to vector<16x128xf32>
      %113 = arith.maximumf %111, %112 : vector<16x128xf32>
      %c1_i32_63 = arith.constant 1 : i32
      %114 = arith.addi %78, %c1_i32_63 : i32
      %cst_64 = arith.constant 0.000000e+00 : f32
      %115 = vector.broadcast %cst_64 : f32 to vector<1x128xf32>
      %116 = vector.extract_strided_slice %113 {offsets = [0, 0], sizes = [15, 128], strides = [1, 1]} : vector<16x128xf32> to vector<15x128xf32>
      %117 = tpu.concatenate %115, %116 in 0 : vector<1x128xf32>, vector<15x128xf32> -> vector<16x128xf32>
      %118 = arith.truncf %117 : vector<16x128xf32> to vector<16x128xbf16>
      %119 = vector.extract_strided_slice %113 {offsets = [1, 0], sizes = [15, 128], strides = [1, 1]} : vector<16x128xf32> to vector<15x128xf32>
      %120 = tpu.concatenate %119, %115 in 0 : vector<15x128xf32>, vector<1x128xf32> -> vector<16x128xf32>
      %121 = arith.truncf %120 : vector<16x128xf32> to vector<16x128xbf16>
      %122 = arith.truncf %113 : vector<16x128xf32> to vector<16x128xbf16>
      %c3_i32_65 = arith.constant 3 : i32
      %123 = arith.muli %c3_i32_65, %114 : i32
      %c0_i32_66 = arith.constant 0 : i32
      %124 = arith.addi %123, %c0_i32_66 : i32
      %125 = arith.index_cast %124 : i32 to index
      %c0_67 = arith.constant 0 : index
      %c0_68 = arith.constant 0 : index
      %126 = vector.load %arg2[%125, %c0_67, %c0_68] : memref<21x128x128xbf16, #tpu.memory_space<vmem>>, vector<1x128x128xbf16>
      %127 = vector.shape_cast %126 : vector<1x128x128xbf16> to vector<128x128xbf16>
      %cst_69 = arith.constant dense<0.000000e+00> : vector<16x128xf32>
      %128 = tpu.matmul %118, %127, %cst_69 {dimension_numbers = #tpu.dot_dimension_numbers<[1], [0], [0], [1], [0, 0, 1, 1], [], []>} : vector<16x128xbf16>, vector<128x128xbf16>, vector<16x128xf32> -> vector<16x128xf32>
      %c3_i32_70 = arith.constant 3 : i32
      %129 = arith.muli %c3_i32_70, %114 : i32
      %c1_i32_71 = arith.constant 1 : i32
      %130 = arith.addi %129, %c1_i32_71 : i32
      %131 = arith.index_cast %130 : i32 to index
      %c0_72 = arith.constant 0 : index
      %c0_73 = arith.constant 0 : index
      %132 = vector.load %arg2[%131, %c0_72, %c0_73] : memref<21x128x128xbf16, #tpu.memory_space<vmem>>, vector<1x128x128xbf16>
      %133 = vector.shape_cast %132 : vector<1x128x128xbf16> to vector<128x128xbf16>
      %cst_74 = arith.constant dense<0.000000e+00> : vector<16x128xf32>
      %134 = tpu.matmul %122, %133, %cst_74 {dimension_numbers = #tpu.dot_dimension_numbers<[1], [0], [0], [1], [0, 0, 1, 1], [], []>} : vector<16x128xbf16>, vector<128x128xbf16>, vector<16x128xf32> -> vector<16x128xf32>
      %135 = arith.addf %128, %134 : vector<16x128xf32>
      %c3_i32_75 = arith.constant 3 : i32
      %136 = arith.muli %c3_i32_75, %114 : i32
      %c2_i32_76 = arith.constant 2 : i32
      %137 = arith.addi %136, %c2_i32_76 : i32
      %138 = arith.index_cast %137 : i32 to index
      %c0_77 = arith.constant 0 : index
      %c0_78 = arith.constant 0 : index
      %139 = vector.load %arg2[%138, %c0_77, %c0_78] : memref<21x128x128xbf16, #tpu.memory_space<vmem>>, vector<1x128x128xbf16>
      %140 = vector.shape_cast %139 : vector<1x128x128xbf16> to vector<128x128xbf16>
      %cst_79 = arith.constant dense<0.000000e+00> : vector<16x128xf32>
      %141 = tpu.matmul %121, %140, %cst_79 {dimension_numbers = #tpu.dot_dimension_numbers<[1], [0], [0], [1], [0, 0, 1, 1], [], []>} : vector<16x128xbf16>, vector<128x128xbf16>, vector<16x128xf32> -> vector<16x128xf32>
      %142 = arith.addf %135, %141 : vector<16x128xf32>
      %143 = arith.index_cast %114 : i32 to index
      %c0_80 = arith.constant 0 : index
      %c0_81 = arith.constant 0 : index
      %144 = vector.load %arg3[%143, %c0_80, %c0_81] : memref<7x1x128xf32, #tpu.memory_space<vmem>>, vector<1x1x128xf32>
      %145 = vector.shape_cast %144 : vector<1x1x128xf32> to vector<1x128xf32>
      %146 = vector.broadcast %145 : vector<1x128xf32> to vector<16x128xf32>
      %147 = arith.addf %142, %146 : vector<16x128xf32>
      %148 = arith.addf %147, %arg6 : vector<16x128xf32>
      scf.yield %148 : vector<16x128xf32>
    }
    %c2_i32_15 = arith.constant 2 : i32
    %cst_16 = arith.constant 0.000000e+00 : f32
    %27 = vector.broadcast %cst_16 : f32 to vector<1x128xf32>
    %28 = vector.extract_strided_slice %26 {offsets = [0, 0], sizes = [15, 128], strides = [1, 1]} : vector<16x128xf32> to vector<15x128xf32>
    %29 = tpu.concatenate %27, %28 in 0 : vector<1x128xf32>, vector<15x128xf32> -> vector<16x128xf32>
    %30 = arith.truncf %29 : vector<16x128xf32> to vector<16x128xbf16>
    %31 = vector.extract_strided_slice %26 {offsets = [1, 0], sizes = [15, 128], strides = [1, 1]} : vector<16x128xf32> to vector<15x128xf32>
    %32 = tpu.concatenate %31, %27 in 0 : vector<15x128xf32>, vector<1x128xf32> -> vector<16x128xf32>
    %33 = arith.truncf %32 : vector<16x128xf32> to vector<16x128xbf16>
    %34 = arith.truncf %26 : vector<16x128xf32> to vector<16x128xbf16>
    %c15 = arith.constant 15 : index
    %c0_17 = arith.constant 0 : index
    %c0_18 = arith.constant 0 : index
    %35 = vector.load %arg2[%c15, %c0_17, %c0_18] : memref<21x128x128xbf16, #tpu.memory_space<vmem>>, vector<1x128x128xbf16>
    %36 = vector.shape_cast %35 : vector<1x128x128xbf16> to vector<128x128xbf16>
    %cst_19 = arith.constant dense<0.000000e+00> : vector<16x128xf32>
    %37 = tpu.matmul %30, %36, %cst_19 {dimension_numbers = #tpu.dot_dimension_numbers<[1], [0], [0], [1], [0, 0, 1, 1], [], []>} : vector<16x128xbf16>, vector<128x128xbf16>, vector<16x128xf32> -> vector<16x128xf32>
    %c16 = arith.constant 16 : index
    %c0_20 = arith.constant 0 : index
    %c0_21 = arith.constant 0 : index
    %38 = vector.load %arg2[%c16, %c0_20, %c0_21] : memref<21x128x128xbf16, #tpu.memory_space<vmem>>, vector<1x128x128xbf16>
    %39 = vector.shape_cast %38 : vector<1x128x128xbf16> to vector<128x128xbf16>
    %cst_22 = arith.constant dense<0.000000e+00> : vector<16x128xf32>
    %40 = tpu.matmul %34, %39, %cst_22 {dimension_numbers = #tpu.dot_dimension_numbers<[1], [0], [0], [1], [0, 0, 1, 1], [], []>} : vector<16x128xbf16>, vector<128x128xbf16>, vector<16x128xf32> -> vector<16x128xf32>
    %41 = arith.addf %37, %40 : vector<16x128xf32>
    %c17 = arith.constant 17 : index
    %c0_23 = arith.constant 0 : index
    %c0_24 = arith.constant 0 : index
    %42 = vector.load %arg2[%c17, %c0_23, %c0_24] : memref<21x128x128xbf16, #tpu.memory_space<vmem>>, vector<1x128x128xbf16>
    %43 = vector.shape_cast %42 : vector<1x128x128xbf16> to vector<128x128xbf16>
    %cst_25 = arith.constant dense<0.000000e+00> : vector<16x128xf32>
    %44 = tpu.matmul %33, %43, %cst_25 {dimension_numbers = #tpu.dot_dimension_numbers<[1], [0], [0], [1], [0, 0, 1, 1], [], []>} : vector<16x128xbf16>, vector<128x128xbf16>, vector<16x128xf32> -> vector<16x128xf32>
    %45 = arith.addf %41, %44 : vector<16x128xf32>
    %c5 = arith.constant 5 : index
    %c0_26 = arith.constant 0 : index
    %c0_27 = arith.constant 0 : index
    %46 = vector.load %arg3[%c5, %c0_26, %c0_27] : memref<7x1x128xf32, #tpu.memory_space<vmem>>, vector<1x1x128xf32>
    %47 = vector.shape_cast %46 : vector<1x1x128xf32> to vector<1x128xf32>
    %48 = vector.broadcast %47 : vector<1x128xf32> to vector<16x128xf32>
    %49 = arith.addf %45, %48 : vector<16x128xf32>
    %50 = arith.addf %49, %24 : vector<16x128xf32>
    %cst_28 = arith.constant 0.000000e+00 : f32
    %51 = vector.broadcast %cst_28 : f32 to vector<1x128xf32>
    %52 = vector.extract_strided_slice %50 {offsets = [0, 0], sizes = [15, 128], strides = [1, 1]} : vector<16x128xf32> to vector<15x128xf32>
    %53 = tpu.concatenate %51, %52 in 0 : vector<1x128xf32>, vector<15x128xf32> -> vector<16x128xf32>
    %54 = arith.truncf %53 : vector<16x128xf32> to vector<16x128xbf16>
    %55 = vector.extract_strided_slice %50 {offsets = [1, 0], sizes = [15, 128], strides = [1, 1]} : vector<16x128xf32> to vector<15x128xf32>
    %56 = tpu.concatenate %55, %51 in 0 : vector<15x128xf32>, vector<1x128xf32> -> vector<16x128xf32>
    %57 = arith.truncf %56 : vector<16x128xf32> to vector<16x128xbf16>
    %58 = arith.truncf %50 : vector<16x128xf32> to vector<16x128xbf16>
    %c18 = arith.constant 18 : index
    %c0_29 = arith.constant 0 : index
    %c0_30 = arith.constant 0 : index
    %59 = vector.load %arg2[%c18, %c0_29, %c0_30] : memref<21x128x128xbf16, #tpu.memory_space<vmem>>, vector<1x128x128xbf16>
    %60 = vector.shape_cast %59 : vector<1x128x128xbf16> to vector<128x128xbf16>
    %cst_31 = arith.constant dense<0.000000e+00> : vector<16x128xf32>
    %61 = tpu.matmul %54, %60, %cst_31 {dimension_numbers = #tpu.dot_dimension_numbers<[1], [0], [0], [1], [0, 0, 1, 1], [], []>} : vector<16x128xbf16>, vector<128x128xbf16>, vector<16x128xf32> -> vector<16x128xf32>
    %c19 = arith.constant 19 : index
    %c0_32 = arith.constant 0 : index
    %c0_33 = arith.constant 0 : index
    %62 = vector.load %arg2[%c19, %c0_32, %c0_33] : memref<21x128x128xbf16, #tpu.memory_space<vmem>>, vector<1x128x128xbf16>
    %63 = vector.shape_cast %62 : vector<1x128x128xbf16> to vector<128x128xbf16>
    %cst_34 = arith.constant dense<0.000000e+00> : vector<16x128xf32>
    %64 = tpu.matmul %58, %63, %cst_34 {dimension_numbers = #tpu.dot_dimension_numbers<[1], [0], [0], [1], [0, 0, 1, 1], [], []>} : vector<16x128xbf16>, vector<128x128xbf16>, vector<16x128xf32> -> vector<16x128xf32>
    %65 = arith.addf %61, %64 : vector<16x128xf32>
    %c20 = arith.constant 20 : index
    %c0_35 = arith.constant 0 : index
    %c0_36 = arith.constant 0 : index
    %66 = vector.load %arg2[%c20, %c0_35, %c0_36] : memref<21x128x128xbf16, #tpu.memory_space<vmem>>, vector<1x128x128xbf16>
    %67 = vector.shape_cast %66 : vector<1x128x128xbf16> to vector<128x128xbf16>
    %cst_37 = arith.constant dense<0.000000e+00> : vector<16x128xf32>
    %68 = tpu.matmul %57, %67, %cst_37 {dimension_numbers = #tpu.dot_dimension_numbers<[1], [0], [0], [1], [0, 0, 1, 1], [], []>} : vector<16x128xbf16>, vector<128x128xbf16>, vector<16x128xf32> -> vector<16x128xf32>
    %69 = arith.addf %65, %68 : vector<16x128xf32>
    %c6 = arith.constant 6 : index
    %c0_38 = arith.constant 0 : index
    %c0_39 = arith.constant 0 : index
    %70 = vector.load %arg3[%c6, %c0_38, %c0_39] : memref<7x1x128xf32, #tpu.memory_space<vmem>>, vector<1x1x128xf32>
    %71 = vector.shape_cast %70 : vector<1x1x128xf32> to vector<1x128xf32>
    %72 = vector.broadcast %71 : vector<1x128xf32> to vector<16x128xf32>
    %73 = arith.addf %69, %72 : vector<16x128xf32>
    %c0_40 = arith.constant 0 : index
    %c0_41 = arith.constant 0 : index
    %c0_42 = arith.constant 0 : index
    %74 = vector.load %arg4[%c0_40, %c0_41, %c0_42] : memref<1x16x128xf32, #tpu.memory_space<vmem>>, vector<1x16x128xf32>
    %75 = vector.shape_cast %74 : vector<1x16x128xf32> to vector<16x128xf32>
    %76 = vector.shape_cast %73 : vector<16x128xf32> to vector<1x16x128xf32>
    tpu.vector_store %arg4[%c0_40, %c0_41, %c0_42], %76 {strides = array<i32>} : memref<1x16x128xf32, #tpu.memory_space<vmem>>, vector<1x16x128xf32>,
    return
  }
  func.func @transform_0(%arg0: i32) -> (i32, i32, i32) {
    %c0_i32 = arith.constant 0 : i32
    %c0_i32_0 = arith.constant 0 : i32
    %c0_i32_1 = arith.constant 0 : i32
    return %arg0, %c0_i32, %c0_i32_0 : i32, i32, i32
  }
  func.func @transform_1(%arg0: i32) -> (i32, i32, i32) {
    %c0_i32 = arith.constant 0 : i32
    %c0_i32_0 = arith.constant 0 : i32
    %c0_i32_1 = arith.constant 0 : i32
    %c0_i32_2 = arith.constant 0 : i32
    return %c0_i32, %c0_i32_0, %c0_i32_1 : i32, i32, i32
  }
  func.func @transform_2(%arg0: i32) -> (i32, i32, i32) {
    %c0_i32 = arith.constant 0 : i32
    %c0_i32_0 = arith.constant 0 : i32
    %c0_i32_1 = arith.constant 0 : i32
    %c0_i32_2 = arith.constant 0 : i32
    return %c0_i32, %c0_i32_0, %c0_i32_1 : i32, i32, i32
  }
  func.func @transform_3(%arg0: i32) -> (i32, i32, i32) {
    %c0_i32 = arith.constant 0 : i32
    %c0_i32_0 = arith.constant 0 : i32
    %c0_i32_1 = arith.constant 0 : i32
    return %arg0, %c0_i32, %c0_i32_0 : i32, i32, i32
  }
}

</mosaic_0001>

<llo_original>
// kernel: tile.43
$region0: #{tile.43}
  #allocation0 [shape = 's32[1]{0}', space=sflag, size = 0x4, scoped, tag = 'scoped memory for tile.43']
  %s0 = inlined_call_operand.vmem [shape: f32[8], index: 0, kind: input, shape index: {}]
  %s1 = inlined_call_operand.vmem [shape: f32[16,8], index: 1, kind: output, shape index: {}]
  // Predicated region
  $region2: #{tile.43} parent=0 // pred_check
    _
  $region3: #{tile.43} parent=0 // pred_check_branch
    %3 = sbr.rel (0) target = $region5
  $region4: #{tile.43} parent=0 // pred_region
    _
  $region5: #{tile.43} parent=0 // pred_fallthru
    _
  %v4 = vld [vmem:[%s0] ss:$0 sm:$0xff]
  %5 = vst [vmem:[%s1] sm:$0xff] %v4
  %s6 = scalar_lea.vmem %s1, 8
  %7 = vst [vmem:[%s6] sm:$0xff] %v4

// kernel: mainnet_forward.1
$region0: #{mainnet_forward.1}
  #allocation0 [shape = 'u32[]', space=smem, size = 0x4, offset = 0x4, fixed_abs, tag = 'smem constant byte address 0x4 - core index']
  #allocation1 [shape = 'u32[72,128]{1,0:T(1,128)}', space=vmem, size = 0x9000, scoped, tag = 'internal scratch']
  %s0 = inlined_call_operand.vmem [shape: f32[2,16,128], index: 0, kind: input, shape index: {}]
  %s1 = inlined_call_operand.vmem [shape: bf16[21,128,128], index: 1, kind: input, shape index: {}]
  %s2 = inlined_call_operand.vmem [shape: f32[7,1,128], index: 2, kind: input, shape index: {}]
  %s3 = inlined_call_operand.vmem [shape: f32[2,16,128], index: 3, kind: output, shape index: {}]
  %s4 = sld [smem:[#allocation0]]
  $region52: #{mainnet_forward.1} parent=0
    _
  %s6 = ssub.s32 1, %s4
  %s7 = scalar_select 0, %s6, %s4
  loop: start=0, step=1, limit=4
  $region2: #{mainnet_forward.1} parent=0 // loop_pre_header
    _
  $region3: #{mainnet_forward.1} parent=0 // loop_header
    %s9 = sphi 0, %s13
    %p10 = scmp.ge.s32.totalorder %s9, 4
    %s19 = sphi 0, %s21
    %s22 = sphi 0, %s19
    %s23 = sphi 0, %s22
    %s39 = sphi 0, %s23
    %s43 = sphi 0, %s43
    %s45 = sphi 0, %s43
    %s46 = sphi 0, %s45
    %s60 = sphi 0, %s46
    %s64 = sphi 0, %s64
    %s66 = sphi 0, %s64
    %s67 = sphi 0, %s66
    %s81 = sphi 0, %s67
    %s87 = sphi 0, %s89
    %s90 = sphi 0, %s87
    %s91 = sphi 0, %s90
    %s107 = sphi 0, %s91
  $region4: #{mainnet_forward.1} parent=0 // loop_header_branch
    %12 = sbr.rel (%p10) target = $region8
  $region5: #{mainnet_forward.1} parent=0 // loop_body
    %s14 = ssub.s32 %s9, 1
    %s15 = ssub.s32 %s9, 2
    %s16 = sadd.s32 %s9, 1
    %s17 = ssub.s32 %s9, %s16
    %p18 = scmp.eq.s32.totalorder %s17, 0
    %s20 = sadd.s32 %s19, 1
    %s21 = scalar_select %p18, %s19, %s20
    %p24 = pneg %p18
    %p25 = scmp.eq.s32.totalorder %s9, 1
    %p26 = por %p24, %p25
    %p27 = scmp.ne.s32.totalorder %s19, %s22
    %p28 = scmp.eq.s32.totalorder %s9, 0
    %p29 = por %p27, %p28
    %p30 = scmp.ne.s32.totalorder %s19, %s22
    %p31 = scmp.eq.s32.totalorder %s14, 1
    %p32 = por %p30, %p31
    %p33 = scmp.ne.s32.totalorder %s22, %s23
    %p34 = scmp.eq.s32.totalorder %s14, 0
    %p35 = por %p33, %p34
    %p36 = scmp.ne.s32.totalorder %s22, %s23
    %p37 = scmp.eq.s32.totalorder %s15, 1
    %p38 = por %p36, %p37
    %p40 = scmp.ne.s32.totalorder %s23, %s39
    %p41 = scmp.eq.s32.totalorder %s15, 0
    %p42 = por %p40, %p41
    %s44 = sadd.s32 %s43, 1
    %p47 = scmp.eq.s32.totalorder %s9, 1
    %p48 = scmp.ne.s32.totalorder %s43, %s45
    %p49 = scmp.eq.s32.totalorder %s9, 0
    %p50 = por %p48, %p49
    %p51 = scmp.ne.s32.totalorder %s43, %s45
    %p52 = scmp.eq.s32.totalorder %s14, 1
    %p53 = por %p51, %p52
    %p54 = scmp.ne.s32.totalorder %s45, %s46
    %p55 = scmp.eq.s32.totalorder %s14, 0
    %p56 = por %p54, %p55
    %p57 = scmp.ne.s32.totalorder %s45, %s46
    %p58 = scmp.eq.s32.totalorder %s15, 1
    %p59 = por %p57, %p58
    %p61 = scmp.ne.s32.totalorder %s46, %s60
    %p62 = scmp.eq.s32.totalorder %s15, 0
    %p63 = por %p61, %p62
    %s65 = sadd.s32 %s64, 1
    %p68 = scmp.eq.s32.totalorder %s9, 1
    %p69 = scmp.ne.s32.totalorder %s64, %s66
    %p70 = scmp.eq.s32.totalorder %s9, 0
    %p71 = por %p69, %p70
    %p72 = scmp.ne.s32.totalorder %s64, %s66
    %p73 = scmp.eq.s32.totalorder %s14, 1
    %p74 = por %p72, %p73
    %p75 = scmp.ne.s32.totalorder %s66, %s67
    %p76 = scmp.eq.s32.totalorder %s14, 0
    %p77 = por %p75, %p76
    %p78 = scmp.ne.s32.totalorder %s66, %s67
    %p79 = scmp.eq.s32.totalorder %s15, 1
    %p80 = por %p78, %p79
    %p82 = scmp.ne.s32.totalorder %s67, %s81
    %p83 = scmp.eq.s32.totalorder %s15, 0
    %p84 = por %p82, %p83
    %s85 = ssub.s32 %s9, %s16
    %p86 = scmp.eq.s32.totalorder %s85, 0
    %s88 = sadd.s32 %s87, 1
    %s89 = scalar_select %p86, %s87, %s88
    %p92 = pneg %p86
    %p93 = scmp.eq.s32.totalorder %s9, 1
    %p94 = por %p92, %p93
    %p95 = scmp.ne.s32.totalorder %s87, %s90
    %p96 = scmp.eq.s32.totalorder %s9, 0
    %p97 = por %p95, %p96
    %p98 = scmp.ne.s32.totalorder %s87, %s90
    %p99 = scmp.eq.s32.totalorder %s14, 1
    %p100 = por %p98, %p99
    %p101 = scmp.ne.s32.totalorder %s90, %s91
    %p102 = scmp.eq.s32.totalorder %s14, 0
    %p103 = por %p101, %p102
    %p104 = scmp.ne.s32.totalorder %s90, %s91
    %p105 = scmp.eq.s32.totalorder %s15, 1
    %p106 = por %p104, %p105
    %p108 = scmp.ne.s32.totalorder %s91, %s107
    %p109 = scmp.eq.s32.totalorder %s15, 0
    %p110 = por %p108, %p109
    %p111 = scmp.le.s32.totalorder 1, %s9
    %p112 = scmp.lt.s32.totalorder %s9, 3
    %p113 = pnand %p111, %p112
    %p114 = pneg %p113
    // Predicated region
    $region9: #{mainnet_forward.1} parent=5 // pred_check
      _
    $region10: #{mainnet_forward.1} parent=5 // pred_check_branch
      %116 = sbr.rel (%p113) target = $region12
    $region11: #{mainnet_forward.1} parent=5 // pred_region
      %s117 = ssub.s32 %s9, 1
      // Predicated region
      $region13: #{mainnet_forward.1} parent=11 // pred_check
        %p118 = pneg %p56
      $region14: #{mainnet_forward.1} parent=11 // pred_check_branch
        %120 = sbr.rel (%p118) target = $region16
      $region15: #{mainnet_forward.1} parent=11 // pred_region
        _
      $region16: #{mainnet_forward.1} parent=11 // pred_fallthru
        _
      // Predicated region
      $region17: #{mainnet_forward.1} parent=11 // pred_check
        %p121 = pneg %p77
      $region18: #{mainnet_forward.1} parent=11 // pred_check_branch
        %123 = sbr.rel (%p121) target = $region20
      $region19: #{mainnet_forward.1} parent=11 // pred_region
        _
      $region20: #{mainnet_forward.1} parent=11 // pred_fallthru
        _
    $region12: #{mainnet_forward.1} parent=5 // pred_fallthru
      _
    %p124 = scmp.lt.s32.totalorder %s9, 2
    // Predicated region
    $region21: #{mainnet_forward.1} parent=5 // pred_check
      %p125 = pneg %p124
    $region22: #{mainnet_forward.1} parent=5 // pred_check_branch
      %127 = sbr.rel (%p125) target = $region24
    $region23: #{mainnet_forward.1} parent=5 // pred_region
      // Predicated region
      $region25: #{mainnet_forward.1} parent=23 // pred_check
        %p128 = pneg %p29
      $region26: #{mainnet_forward.1} parent=23 // pred_check_branch
        %130 = sbr.rel (%p128) target = $region28
      $region27: #{mainnet_forward.1} parent=23 // pred_region
        %p131 = scmp.lt.s32.totalorder %s9, 1
        %s132 = scalar_select %p131, %s9, 1
        %s133 = smul.addr %s132, 2
        %s134 = smul.addr %s133, 8
        %s135 = scalar_lea.vmem %s0, %s134
      $region28: #{mainnet_forward.1} parent=23 // pred_fallthru
        _
    $region24: #{mainnet_forward.1} parent=5 // pred_fallthru
      _
    %p136 = scmp.le.s32.totalorder 1, %s9
    %p137 = scmp.lt.s32.totalorder %s9, 3
    %p138 = pnand %p136, %p137
    %p139 = pneg %p138
    // Predicated region
    $region29: #{mainnet_forward.1} parent=5 // pred_check
      _
    $region30: #{mainnet_forward.1} parent=5 // pred_check_branch
      %141 = sbr.rel (%p138) target = $region32
    $region31: #{mainnet_forward.1} parent=5 // pred_region
      %s142 = ssub.s32 %s9, 1
      %p143 = scmp.lt.s32.totalorder %s14, 1
      %s144 = scalar_select %p143, %s14, 1
      %s145 = smul.addr %s144, 2
      %s146 = smul.addr %s145, 8
      %s147 = scalar_lea.vmem %s0, %s146
      %p148 = pneg %p35
      %p149 = pneg %p32
      %p150 = pneg %p56
      %p151 = pneg %p53
      %p152 = pneg %p77
      %p153 = pneg %p74
      %p154 = pneg %p103
      %p155 = pneg %p100
      %p156 = scmp.lt.s32.totalorder %s14, 1
      %s157 = scalar_select %p156, %s14, 1
      %s158 = smul.addr %s157, 2
      %s159 = smul.addr %s158, 8
      %s160 = scalar_lea.vmem %s3, %s159
      %p161 = scmp.lt.s32.totalorder %s14, 1
      %s162 = scalar_select %p161, %s14, 1
      %s163 = smul.addr %s162, 2
      %s164 = smul.addr %s163, 8
      %s165 = scalar_lea.vmem %s0, %s164
      %p166 = scmp.lt.s32.totalorder %s14, 1
      %s167 = scalar_select %p166, %s14, 1
      %s168 = smul.addr %s167, 2
      %s169 = smul.addr %s168, 8
      %s170 = scalar_lea.vmem %s3, %s169
      %v171 = vld [vmem:[%s165] sm:$0xff]
      %v172 = vld [vmem:[%s165 + $0x8] sm:$0xff]
      %vm175 = vcmask 1040384
      %v176 = vrot.slane %v171, 7
      %v177 = vrot.slane %v172, 7
      %v178 = vsel %vm175, %v176, %v177
      %v181 = vsel %vm175, 0.0, %v176
      %v182 = vpack.c.bf16 %v178, %v181
      %vm183 = vcmask 1046528
      %v184 = vrot.slane %v171, 1
      %v185 = vrot.slane %v172, 1
      %v186 = vsel %vm183, %v184, %v185
      %v189 = vsel %vm183, %v185, 0.0
      %v190 = vpack.c.bf16 %v189, %v186
      %v191 = vpack.c.bf16 %v172, %v171
      %v192 = vld [vmem:[%s1] sm:$0xf]
      %v193 = vld [vmem:[%s1 + $0x4] sm:$0xf]
      %v194 = vld [vmem:[%s1 + $0x8] sm:$0xf]
      %v195 = vld [vmem:[%s1 + $0xc] sm:$0xf]
      %v196 = vld [vmem:[%s1 + $0x10] sm:$0xf]
      %v197 = vld [vmem:[%s1 + $0x14] sm:$0xf]
      %v198 = vld [vmem:[%s1 + $0x18] sm:$0xf]
      %v199 = vld [vmem:[%s1 + $0x1c] sm:$0xf]
      %v200 = vld [vmem:[%s1 + $0x20] sm:$0xf]
      %v201 = vld [vmem:[%s1 + $0x24] sm:$0xf]
      %v202 = vld [vmem:[%s1 + $0x28] sm:$0xf]
      %v203 = vld [vmem:[%s1 + $0x2c] sm:$0xf]
      %v204 = vld [vmem:[%s1 + $0x30] sm:$0xf]
      %v205 = vld [vmem:[%s1 + $0x34] sm:$0xf]
      %v206 = vld [vmem:[%s1 + $0x38] sm:$0xf]
      %v207 = vld [vmem:[%s1 + $0x3c] sm:$0xf]
      %s208 = scalar_lea.vmem %s1, 64
      %v209 = vld [vmem:[%s208] sm:$0xf]
      %v210 = vld [vmem:[%s208 + $0x4] sm:$0xf]
      %v211 = vld [vmem:[%s208 + $0x8] sm:$0xf]
      %v212 = vld [vmem:[%s208 + $0xc] sm:$0xf]
      %v213 = vld [vmem:[%s208 + $0x10] sm:$0xf]
      %v214 = vld [vmem:[%s208 + $0x14] sm:$0xf]
      %v215 = vld [vmem:[%s208 + $0x18] sm:$0xf]
      %v216 = vld [vmem:[%s208 + $0x1c] sm:$0xf]
      %v217 = vld [vmem:[%s208 + $0x20] sm:$0xf]
      %v218 = vld [vmem:[%s208 + $0x24] sm:$0xf]
      %v219 = vld [vmem:[%s208 + $0x28] sm:$0xf]
      %v220 = vld [vmem:[%s208 + $0x2c] sm:$0xf]
      %v221 = vld [vmem:[%s208 + $0x30] sm:$0xf]
      %v222 = vld [vmem:[%s208 + $0x34] sm:$0xf]
      %v223 = vld [vmem:[%s208 + $0x38] sm:$0xf]
      %v224 = vld [vmem:[%s208 + $0x3c] sm:$0xf]
      %v241 = vunpack.c.l.b16 %v209
      %v242 = vunpack.c.l.b16 %v210
      %v243 = vunpack.c.l.b16 %v211
      %v244 = vunpack.c.l.b16 %v212
      %v245 = vunpack.c.l.b16 %v213
      %v246 = vunpack.c.l.b16 %v214
      %v247 = vunpack.c.l.b16 %v215
      %v248 = vunpack.c.l.b16 %v216
      %v249 = vunpack.c.l.b16 %v217
      %v250 = vunpack.c.l.b16 %v218
      %v251 = vunpack.c.l.b16 %v219
      %v252 = vunpack.c.l.b16 %v220
      %v253 = vunpack.c.l.b16 %v221
      %v254 = vunpack.c.l.b16 %v222
      %v255 = vunpack.c.l.b16 %v223
      %v256 = vunpack.c.l.b16 %v224
      %v257 = vpack.c.b16 %v242, %v241
      %v258 = vpack.c.b16 %v244, %v243
      %v259 = vpack.c.b16 %v246, %v245
      %v260 = vpack.c.b16 %v248, %v247
      %v261 = vpack.c.b16 %v250, %v249
      %v262 = vpack.c.b16 %v252, %v251
      %v263 = vpack.c.b16 %v254, %v253
      %v264 = vpack.c.b16 %v256, %v255
      %273 = vmatpush.bf16.msra.mxu0 %v264
      %274 = vmatpush.bf16.msra.mxu0 %v263
      %275 = vmatpush.bf16.msra.mxu0 %v262
      %276 = vmatpush.bf16.msra.mxu0 %v261
      %277 = vmatpush.bf16.msra.mxu0 %v260
      %278 = vmatpush.bf16.msra.mxu0 %v259
      %279 = vmatpush.bf16.msra.mxu0 %v258
      %280 = vmatpush.bf16.msra.mxu0 %v257
      %281 = vmatmul.bf16.gmra.mxu0 %v191
      %v282 = vpop.f32.mrf.mxu0
      %v283 = vadd.f32 0.0, %v282
      %v284 = vpop.f32.mrf.mxu0
      %v285 = vadd.f32 0.0, %v284
      %286 = vdwg.mxu0
      %v303 = vunpack.c.l.b16 %v192
      %v304 = vunpack.c.l.b16 %v193
      %v305 = vunpack.c.l.b16 %v194
      %v306 = vunpack.c.l.b16 %v195
      %v307 = vunpack.c.l.b16 %v196
      %v308 = vunpack.c.l.b16 %v197
      %v309 = vunpack.c.l.b16 %v198
      %v310 = vunpack.c.l.b16 %v199
      %v311 = vunpack.c.l.b16 %v200
      %v312 = vunpack.c.l.b16 %v201
      %v313 = vunpack.c.l.b16 %v202
      %v314 = vunpack.c.l.b16 %v203
      %v315 = vunpack.c.l.b16 %v204
      %v316 = vunpack.c.l.b16 %v205
      %v317 = vunpack.c.l.b16 %v206
      %v318 = vunpack.c.l.b16 %v207
      %v319 = vpack.c.b16 %v304, %v303
      %v320 = vpack.c.b16 %v306, %v305
      %v321 = vpack.c.b16 %v308, %v307
      %v322 = vpack.c.b16 %v310, %v309
      %v323 = vpack.c.b16 %v312, %v311
      %v324 = vpack.c.b16 %v314, %v313
      %v325 = vpack.c.b16 %v316, %v315
      %v326 = vpack.c.b16 %v318, %v317
      %335 = vmatpush.bf16.msra.mxu0 %v326
      %336 = vmatpush.bf16.msra.mxu0 %v325
      %337 = vmatpush.bf16.msra.mxu0 %v324
      %338 = vmatpush.bf16.msra.mxu0 %v323
      %339 = vmatpush.bf16.msra.mxu0 %v322
      %340 = vmatpush.bf16.msra.mxu0 %v321
      %341 = vmatpush.bf16.msra.mxu0 %v320
      %342 = vmatpush.bf16.msra.mxu0 %v319
      %343 = vmatmul.bf16.gmra.mxu0 %v182
      %v344 = vpop.f32.mrf.mxu0
      %v345 = vadd.f32 %v283, %v344
      %v346 = vpop.f32.mrf.mxu0
      %v347 = vadd.f32 %v285, %v346
      %348 = vdwg.mxu0
      %s349 = scalar_lea.vmem %s1, 128
      %v350 = vld [vmem:[%s349] sm:$0xf]
      %v351 = vld [vmem:[%s349 + $0x4] sm:$0xf]
      %v352 = vld [vmem:[%s349 + $0x8] sm:$0xf]
      %v353 = vld [vmem:[%s349 + $0xc] sm:$0xf]
      %v354 = vld [vmem:[%s349 + $0x10] sm:$0xf]
      %v355 = vld [vmem:[%s349 + $0x14] sm:$0xf]
      %v356 = vld [vmem:[%s349 + $0x18] sm:$0xf]
      %v357 = vld [vmem:[%s349 + $0x1c] sm:$0xf]
      %v358 = vld [vmem:[%s349 + $0x20] sm:$0xf]
      %v359 = vld [vmem:[%s349 + $0x24] sm:$0xf]
      %v360 = vld [vmem:[%s349 + $0x28] sm:$0xf]
      %v361 = vld [vmem:[%s349 + $0x2c] sm:$0xf]
      %v362 = vld [vmem:[%s349 + $0x30] sm:$0xf]
      %v363 = vld [vmem:[%s349 + $0x34] sm:$0xf]
      %v364 = vld [vmem:[%s349 + $0x38] sm:$0xf]
      %v365 = vld [vmem:[%s349 + $0x3c] sm:$0xf]
      %v382 = vunpack.c.l.b16 %v350
      %v383 = vunpack.c.l.b16 %v351
      %v384 = vunpack.c.l.b16 %v352
      %v385 = vunpack.c.l.b16 %v353
      %v386 = vunpack.c.l.b16 %v354
      %v387 = vunpack.c.l.b16 %v355
      %v388 = vunpack.c.l.b16 %v356
      %v389 = vunpack.c.l.b16 %v357
      %v390 = vunpack.c.l.b16 %v358
      %v391 = vunpack.c.l.b16 %v359
      %v392 = vunpack.c.l.b16 %v360
      %v393 = vunpack.c.l.b16 %v361
      %v394 = vunpack.c.l.b16 %v362
      %v395 = vunpack.c.l.b16 %v363
      %v396 = vunpack.c.l.b16 %v364
      %v397 = vunpack.c.l.b16 %v365
      %v398 = vpack.c.b16 %v383, %v382
      %v399 = vpack.c.b16 %v385, %v384
      %v400 = vpack.c.b16 %v387, %v386
      %v401 = vpack.c.b16 %v389, %v388
      %v402 = vpack.c.b16 %v391, %v390
      %v403 = vpack.c.b16 %v393, %v392
      %v404 = vpack.c.b16 %v395, %v394
      %v405 = vpack.c.b16 %v397, %v396
      %414 = vmatpush.bf16.msra.mxu0 %v405
      %415 = vmatpush.bf16.msra.mxu0 %v404
      %416 = vmatpush.bf16.msra.mxu0 %v403
      %417 = vmatpush.bf16.msra.mxu0 %v402
      %418 = vmatpush.bf16.msra.mxu0 %v401
      %419 = vmatpush.bf16.msra.mxu0 %v400
      %420 = vmatpush.bf16.msra.mxu0 %v399
      %421 = vmatpush.bf16.msra.mxu0 %v398
      %422 = vmatmul.bf16.gmra.mxu0 %v190
      %v423 = vpop.f32.mrf.mxu0
      %v424 = vadd.f32 0.0, %v423
      %v425 = vpop.f32.mrf.mxu0
      %v426 = vadd.f32 0.0, %v425
      %427 = vdwg.mxu0
      %v428 = vadd.f32 %v345, %v424
      %v429 = vadd.f32 %v347, %v426
      %v430 = vld [vmem:[%s2] sm:$0x1]
      %v432 = vperm.slane %v430, 0
      %v434 = vadd.f32 %v428, %v432
      %v435 = vadd.f32 %v429, %v432
      loop: start=0, step=1, limit=2
      $region33: #{mainnet_forward.1} parent=31 // loop_pre_header
        _
      $region34: #{mainnet_forward.1} parent=31 // loop_header
        %s437 = sphi 0, %s441
        %p438 = scmp.ge.s32.totalorder %s437, 2
        %v442 = vphi %v434, %v993
        %v443 = vphi %v435, %v994
      $region35: #{mainnet_forward.1} parent=31 // loop_header_branch
        %440 = sbr.rel (%p438) target = $region39
      $region36: #{mainnet_forward.1} parent=31 // loop_body
        %s444 = smul.u32 %s437, 2
        %s445 = sadd.s32 %s444, 1
        %v448 = vrot.slane %v442, 7
        %v449 = vrot.slane %v443, 7
        %v450 = vsel %vm175, %v448, %v449
        %v453 = vsel %vm175, 0.0, %v448
        %v454 = vpack.c.bf16 %v450, %v453
        %v455 = vrot.slane %v442, 1
        %v456 = vrot.slane %v443, 1
        %v457 = vsel %vm183, %v455, %v456
        %v460 = vsel %vm183, %v456, 0.0
        %v461 = vpack.c.bf16 %v460, %v457
        %v462 = vpack.c.bf16 %v443, %v442
        %s463 = smul.u32 %s445, 3
        %s464 = smul.u32 %s463, 16
        %s465 = smul.addr %s464, 4
        %s466 = scalar_lea.vmem %s1, %s465
        %v467 = vld [vmem:[%s466] sm:$0xf]
        %v468 = vld [vmem:[%s466 + $0x4] sm:$0xf]
        %v469 = vld [vmem:[%s466 + $0x8] sm:$0xf]
        %v470 = vld [vmem:[%s466 + $0xc] sm:$0xf]
        %v471 = vld [vmem:[%s466 + $0x10] sm:$0xf]
        %v472 = vld [vmem:[%s466 + $0x14] sm:$0xf]
        %v473 = vld [vmem:[%s466 + $0x18] sm:$0xf]
        %v474 = vld [vmem:[%s466 + $0x1c] sm:$0xf]
        %v475 = vld [vmem:[%s466 + $0x20] sm:$0xf]
        %v476 = vld [vmem:[%s466 + $0x24] sm:$0xf]
        %v477 = vld [vmem:[%s466 + $0x28] sm:$0xf]
        %v478 = vld [vmem:[%s466 + $0x2c] sm:$0xf]
        %v479 = vld [vmem:[%s466 + $0x30] sm:$0xf]
        %v480 = vld [vmem:[%s466 + $0x34] sm:$0xf]
        %v481 = vld [vmem:[%s466 + $0x38] sm:$0xf]
        %v482 = vld [vmem:[%s466 + $0x3c] sm:$0xf]
        %s483 = sadd.s32 %s463, 1
        %s484 = smul.u32 %s483, 16
        %s485 = smul.addr %s484, 4
        %s486 = scalar_lea.vmem %s1, %s485
        %v487 = vld [vmem:[%s486] sm:$0xf]
        %v488 = vld [vmem:[%s486 + $0x4] sm:$0xf]
        %v489 = vld [vmem:[%s486 + $0x8] sm:$0xf]
        %v490 = vld [vmem:[%s486 + $0xc] sm:$0xf]
        %v491 = vld [vmem:[%s486 + $0x10] sm:$0xf]
        %v492 = vld [vmem:[%s486 + $0x14] sm:$0xf]
        %v493 = vld [vmem:[%s486 + $0x18] sm:$0xf]
        %v494 = vld [vmem:[%s486 + $0x1c] sm:$0xf]
        %v495 = vld [vmem:[%s486 + $0x20] sm:$0xf]
        %v496 = vld [vmem:[%s486 + $0x24] sm:$0xf]
        %v497 = vld [vmem:[%s486 + $0x28] sm:$0xf]
        %v498 = vld [vmem:[%s486 + $0x2c] sm:$0xf]
        %v499 = vld [vmem:[%s486 + $0x30] sm:$0xf]
        %v500 = vld [vmem:[%s486 + $0x34] sm:$0xf]
        %v501 = vld [vmem:[%s486 + $0x38] sm:$0xf]
        %v502 = vld [vmem:[%s486 + $0x3c] sm:$0xf]
        %v519 = vunpack.c.l.b16 %v487
        %v520 = vunpack.c.l.b16 %v488
        %v521 = vunpack.c.l.b16 %v489
        %v522 = vunpack.c.l.b16 %v490
        %v523 = vunpack.c.l.b16 %v491
        %v524 = vunpack.c.l.b16 %v492
        %v525 = vunpack.c.l.b16 %v493
        %v526 = vunpack.c.l.b16 %v494
        %v527 = vunpack.c.l.b16 %v495
        %v528 = vunpack.c.l.b16 %v496
        %v529 = vunpack.c.l.b16 %v497
        %v530 = vunpack.c.l.b16 %v498
        %v531 = vunpack.c.l.b16 %v499
        %v532 = vunpack.c.l.b16 %v500
        %v533 = vunpack.c.l.b16 %v501
        %v534 = vunpack.c.l.b16 %v502
        %v535 = vpack.c.b16 %v520, %v519
        %v536 = vpack.c.b16 %v522, %v521
        %v537 = vpack.c.b16 %v524, %v523
        %v538 = vpack.c.b16 %v526, %v525
        %v539 = vpack.c.b16 %v528, %v527
        %v540 = vpack.c.b16 %v530, %v529
        %v541 = vpack.c.b16 %v532, %v531
        %v542 = vpack.c.b16 %v534, %v533
        %551 = vmatpush.bf16.msra.mxu0 %v542
        %552 = vmatpush.bf16.msra.mxu0 %v541
        %553 = vmatpush.bf16.msra.mxu0 %v540
        %554 = vmatpush.bf16.msra.mxu0 %v539
        %555 = vmatpush.bf16.msra.mxu0 %v538
        %556 = vmatpush.bf16.msra.mxu0 %v537
        %557 = vmatpush.bf16.msra.mxu0 %v536
        %558 = vmatpush.bf16.msra.mxu0 %v535
        %559 = vmatmul.bf16.gmra.mxu0 %v462
        %v560 = vpop.f32.mrf.mxu0
        %v561 = vadd.f32 0.0, %v560
        %v562 = vpop.f32.mrf.mxu0
        %v563 = vadd.f32 0.0, %v562
        %564 = vdwg.mxu0
        %v581 = vunpack.c.l.b16 %v467
        %v582 = vunpack.c.l.b16 %v468
        %v583 = vunpack.c.l.b16 %v469
        %v584 = vunpack.c.l.b16 %v470
        %v585 = vunpack.c.l.b16 %v471
        %v586 = vunpack.c.l.b16 %v472
        %v587 = vunpack.c.l.b16 %v473
        %v588 = vunpack.c.l.b16 %v474
        %v589 = vunpack.c.l.b16 %v475
        %v590 = vunpack.c.l.b16 %v476
        %v591 = vunpack.c.l.b16 %v477
        %v592 = vunpack.c.l.b16 %v478
        %v593 = vunpack.c.l.b16 %v479
        %v594 = vunpack.c.l.b16 %v480
        %v595 = vunpack.c.l.b16 %v481
        %v596 = vunpack.c.l.b16 %v482
        %v597 = vpack.c.b16 %v582, %v581
        %v598 = vpack.c.b16 %v584, %v583
        %v599 = vpack.c.b16 %v586, %v585
        %v600 = vpack.c.b16 %v588, %v587
        %v601 = vpack.c.b16 %v590, %v589
        %v602 = vpack.c.b16 %v592, %v591
        %v603 = vpack.c.b16 %v594, %v593
        %v604 = vpack.c.b16 %v596, %v595
        %613 = vmatpush.bf16.msra.mxu0 %v604
        %614 = vmatpush.bf16.msra.mxu0 %v603
        %615 = vmatpush.bf16.msra.mxu0 %v602
        %616 = vmatpush.bf16.msra.mxu0 %v601
        %617 = vmatpush.bf16.msra.mxu0 %v600
        %618 = vmatpush.bf16.msra.mxu0 %v599
        %619 = vmatpush.bf16.msra.mxu0 %v598
        %620 = vmatpush.bf16.msra.mxu0 %v597
        %621 = vmatmul.bf16.gmra.mxu0 %v454
        %v622 = vpop.f32.mrf.mxu0
        %v623 = vadd.f32 %v561, %v622
        %v624 = vpop.f32.mrf.mxu0
        %v625 = vadd.f32 %v563, %v624
        %626 = vdwg.mxu0
        %s627 = sadd.s32 %s463, 2
        %s628 = smul.u32 %s627, 16
        %s629 = smul.addr %s628, 4
        %s630 = scalar_lea.vmem %s1, %s629
        %v631 = vld [vmem:[%s630] sm:$0xf]
        %v632 = vld [vmem:[%s630 + $0x4] sm:$0xf]
        %v633 = vld [vmem:[%s630 + $0x8] sm:$0xf]
        %v634 = vld [vmem:[%s630 + $0xc] sm:$0xf]
        %v635 = vld [vmem:[%s630 + $0x10] sm:$0xf]
        %v636 = vld [vmem:[%s630 + $0x14] sm:$0xf]
        %v637 = vld [vmem:[%s630 + $0x18] sm:$0xf]
        %v638 = vld [vmem:[%s630 + $0x1c] sm:$0xf]
        %v639 = vld [vmem:[%s630 + $0x20] sm:$0xf]
        %v640 = vld [vmem:[%s630 + $0x24] sm:$0xf]
        %v641 = vld [vmem:[%s630 + $0x28] sm:$0xf]
        %v642 = vld [vmem:[%s630 + $0x2c] sm:$0xf]
        %v643 = vld [vmem:[%s630 + $0x30] sm:$0xf]
        %v644 = vld [vmem:[%s630 + $0x34] sm:$0xf]
        %v645 = vld [vmem:[%s630 + $0x38] sm:$0xf]
        %v646 = vld [vmem:[%s630 + $0x3c] sm:$0xf]
        %v663 = vunpack.c.l.b16 %v631
        %v664 = vunpack.c.l.b16 %v632
        %v665 = vunpack.c.l.b16 %v633
        %v666 = vunpack.c.l.b16 %v634
        %v667 = vunpack.c.l.b16 %v635
        %v668 = vunpack.c.l.b16 %v636
        %v669 = vunpack.c.l.b16 %v637
        %v670 = vunpack.c.l.b16 %v638
        %v671 = vunpack.c.l.b16 %v639
        %v672 = vunpack.c.l.b16 %v640
        %v673 = vunpack.c.l.b16 %v641
        %v674 = vunpack.c.l.b16 %v642
        %v675 = vunpack.c.l.b16 %v643
        %v676 = vunpack.c.l.b16 %v644
        %v677 = vunpack.c.l.b16 %v645
        %v678 = vunpack.c.l.b16 %v646
        %v679 = vpack.c.b16 %v664, %v663
        %v680 = vpack.c.b16 %v666, %v665
        %v681 = vpack.c.b16 %v668, %v667
        %v682 = vpack.c.b16 %v670, %v669
        %v683 = vpack.c.b16 %v672, %v671
        %v684 = vpack.c.b16 %v674, %v673
        %v685 = vpack.c.b16 %v676, %v675
        %v686 = vpack.c.b16 %v678, %v677
        %695 = vmatpush.bf16.msra.mxu0 %v686
        %696 = vmatpush.bf16.msra.mxu0 %v685
        %697 = vmatpush.bf16.msra.mxu0 %v684
        %698 = vmatpush.bf16.msra.mxu0 %v683
        %699 = vmatpush.bf16.msra.mxu0 %v682
        %700 = vmatpush.bf16.msra.mxu0 %v681
        %701 = vmatpush.bf16.msra.mxu0 %v680
        %702 = vmatpush.bf16.msra.mxu0 %v679
        %703 = vmatmul.bf16.gmra.mxu0 %v461
        %v704 = vpop.f32.mrf.mxu0
        %v705 = vadd.f32 0.0, %v704
        %v706 = vpop.f32.mrf.mxu0
        %v707 = vadd.f32 0.0, %v706
        %708 = vdwg.mxu0
        %v709 = vadd.f32 %v623, %v705
        %v710 = vadd.f32 %v625, %v707
        %s711 = scalar_lea.vmem %s2, %s445
        %v712 = vld [vmem:[%s711] sm:$0x1]
        %v714 = vperm.slane %v712, 0
        %v716 = vadd.f32 %v709, %v714
        %v717 = vadd.f32 %v710, %v714
        %v718 = vmax.f32 %v716, 0.0
        %v719 = vmax.f32 %v717, 0.0
        %s720 = sadd.s32 %s444, 2
        %v723 = vrot.slane %v718, 7
        %v724 = vrot.slane %v719, 7
        %v725 = vsel %vm175, %v723, %v724
        %v728 = vsel %vm175, 0.0, %v723
        %v729 = vpack.c.bf16 %v725, %v728
        %v730 = vrot.slane %v718, 1
        %v731 = vrot.slane %v719, 1
        %v732 = vsel %vm183, %v730, %v731
        %v735 = vsel %vm183, %v731, 0.0
        %v736 = vpack.c.bf16 %v735, %v732
        %v737 = vpack.c.bf16 %v719, %v718
        %s738 = smul.u32 %s720, 3
        %s739 = smul.u32 %s738, 16
        %s740 = smul.addr %s739, 4
        %s741 = scalar_lea.vmem %s1, %s740
        %v742 = vld [vmem:[%s741] sm:$0xf]
        %v743 = vld [vmem:[%s741 + $0x4] sm:$0xf]
        %v744 = vld [vmem:[%s741 + $0x8] sm:$0xf]
        %v745 = vld [vmem:[%s741 + $0xc] sm:$0xf]
        %v746 = vld [vmem:[%s741 + $0x10] sm:$0xf]
        %v747 = vld [vmem:[%s741 + $0x14] sm:$0xf]
        %v748 = vld [vmem:[%s741 + $0x18] sm:$0xf]
        %v749 = vld [vmem:[%s741 + $0x1c] sm:$0xf]
        %v750 = vld [vmem:[%s741 + $0x20] sm:$0xf]
        %v751 = vld [vmem:[%s741 + $0x24] sm:$0xf]
        %v752 = vld [vmem:[%s741 + $0x28] sm:$0xf]
        %v753 = vld [vmem:[%s741 + $0x2c] sm:$0xf]
        %v754 = vld [vmem:[%s741 + $0x30] sm:$0xf]
        %v755 = vld [vmem:[%s741 + $0x34] sm:$0xf]
        %v756 = vld [vmem:[%s741 + $0x38] sm:$0xf]
        %v757 = vld [vmem:[%s741 + $0x3c] sm:$0xf]
        %s758 = sadd.s32 %s738, 1
        %s759 = smul.u32 %s758, 16
        %s760 = smul.addr %s759, 4
        %s761 = scalar_lea.vmem %s1, %s760
        %v762 = vld [vmem:[%s761] sm:$0xf]
        %v763 = vld [vmem:[%s761 + $0x4] sm:$0xf]
        %v764 = vld [vmem:[%s761 + $0x8] sm:$0xf]
        %v765 = vld [vmem:[%s761 + $0xc] sm:$0xf]
        %v766 = vld [vmem:[%s761 + $0x10] sm:$0xf]
        %v767 = vld [vmem:[%s761 + $0x14] sm:$0xf]
        %v768 = vld [vmem:[%s761 + $0x18] sm:$0xf]
        %v769 = vld [vmem:[%s761 + $0x1c] sm:$0xf]
        %v770 = vld [vmem:[%s761 + $0x20] sm:$0xf]
        %v771 = vld [vmem:[%s761 + $0x24] sm:$0xf]
        %v772 = vld [vmem:[%s761 + $0x28] sm:$0xf]
        %v773 = vld [vmem:[%s761 + $0x2c] sm:$0xf]
        %v774 = vld [vmem:[%s761 + $0x30] sm:$0xf]
        %v775 = vld [vmem:[%s761 + $0x34] sm:$0xf]
        %v776 = vld [vmem:[%s761 + $0x38] sm:$0xf]
        %v777 = vld [vmem:[%s761 + $0x3c] sm:$0xf]
        %v794 = vunpack.c.l.b16 %v762
        %v795 = vunpack.c.l.b16 %v763
        %v796 = vunpack.c.l.b16 %v764
        %v797 = vunpack.c.l.b16 %v765
        %v798 = vunpack.c.l.b16 %v766
        %v799 = vunpack.c.l.b16 %v767
        %v800 = vunpack.c.l.b16 %v768
        %v801 = vunpack.c.l.b16 %v769
        %v802 = vunpack.c.l.b16 %v770
        %v803 = vunpack.c.l.b16 %v771
        %v804 = vunpack.c.l.b16 %v772
        %v805 = vunpack.c.l.b16 %v773
        %v806 = vunpack.c.l.b16 %v774
        %v807 = vunpack.c.l.b16 %v775
        %v808 = vunpack.c.l.b16 %v776
        %v809 = vunpack.c.l.b16 %v777
        %v810 = vpack.c.b16 %v795, %v794
        %v811 = vpack.c.b16 %v797, %v796
        %v812 = vpack.c.b16 %v799, %v798
        %v813 = vpack.c.b16 %v801, %v800
        %v814 = vpack.c.b16 %v803, %v802
        %v815 = vpack.c.b16 %v805, %v804
        %v816 = vpack.c.b16 %v807, %v806
        %v817 = vpack.c.b16 %v809, %v808
        %826 = vmatpush.bf16.msra.mxu0 %v817
        %827 = vmatpush.bf16.msra.mxu0 %v816
        %828 = vmatpush.bf16.msra.mxu0 %v815
        %829 = vmatpush.bf16.msra.mxu0 %v814
        %830 = vmatpush.bf16.msra.mxu0 %v813
        %831 = vmatpush.bf16.msra.mxu0 %v812
        %832 = vmatpush.bf16.msra.mxu0 %v811
        %833 = vmatpush.bf16.msra.mxu0 %v810
        %834 = vmatmul.bf16.gmra.mxu0 %v737
        %v835 = vpop.f32.mrf.mxu0
        %v836 = vadd.f32 0.0, %v835
        %v837 = vpop.f32.mrf.mxu0
        %v838 = vadd.f32 0.0, %v837
        %839 = vdwg.mxu0
        %v856 = vunpack.c.l.b16 %v742
        %v857 = vunpack.c.l.b16 %v743
        %v858 = vunpack.c.l.b16 %v744
        %v859 = vunpack.c.l.b16 %v745
        %v860 = vunpack.c.l.b16 %v746
        %v861 = vunpack.c.l.b16 %v747
        %v862 = vunpack.c.l.b16 %v748
        %v863 = vunpack.c.l.b16 %v749
        %v864 = vunpack.c.l.b16 %v750
        %v865 = vunpack.c.l.b16 %v751
        %v866 = vunpack.c.l.b16 %v752
        %v867 = vunpack.c.l.b16 %v753
        %v868 = vunpack.c.l.b16 %v754
        %v869 = vunpack.c.l.b16 %v755
        %v870 = vunpack.c.l.b16 %v756
        %v871 = vunpack.c.l.b16 %v757
        %v872 = vpack.c.b16 %v857, %v856
        %v873 = vpack.c.b16 %v859, %v858
        %v874 = vpack.c.b16 %v861, %v860
        %v875 = vpack.c.b16 %v863, %v862
        %v876 = vpack.c.b16 %v865, %v864
        %v877 = vpack.c.b16 %v867, %v866
        %v878 = vpack.c.b16 %v869, %v868
        %v879 = vpack.c.b16 %v871, %v870
        %888 = vmatpush.bf16.msra.mxu0 %v879
        %889 = vmatpush.bf16.msra.mxu0 %v878
        %890 = vmatpush.bf16.msra.mxu0 %v877
        %891 = vmatpush.bf16.msra.mxu0 %v876
        %892 = vmatpush.bf16.msra.mxu0 %v875
        %893 = vmatpush.bf16.msra.mxu0 %v874
        %894 = vmatpush.bf16.msra.mxu0 %v873
        %895 = vmatpush.bf16.msra.mxu0 %v872
        %896 = vmatmul.bf16.gmra.mxu0 %v729
        %v897 = vpop.f32.mrf.mxu0
        %v898 = vadd.f32 %v836, %v897
        %v899 = vpop.f32.mrf.mxu0
        %v900 = vadd.f32 %v838, %v899
        %901 = vdwg.mxu0
        %s902 = sadd.s32 %s738, 2
        %s903 = smul.u32 %s902, 16
        %s904 = smul.addr %s903, 4
        %s905 = scalar_lea.vmem %s1, %s904
        %v906 = vld [vmem:[%s905] sm:$0xf]
        %v907 = vld [vmem:[%s905 + $0x4] sm:$0xf]
        %v908 = vld [vmem:[%s905 + $0x8] sm:$0xf]
        %v909 = vld [vmem:[%s905 + $0xc] sm:$0xf]
        %v910 = vld [vmem:[%s905 + $0x10] sm:$0xf]
        %v911 = vld [vmem:[%s905 + $0x14] sm:$0xf]
        %v912 = vld [vmem:[%s905 + $0x18] sm:$0xf]
        %v913 = vld [vmem:[%s905 + $0x1c] sm:$0xf]
        %v914 = vld [vmem:[%s905 + $0x20] sm:$0xf]
        %v915 = vld [vmem:[%s905 + $0x24] sm:$0xf]
        %v916 = vld [vmem:[%s905 + $0x28] sm:$0xf]
        %v917 = vld [vmem:[%s905 + $0x2c] sm:$0xf]
        %v918 = vld [vmem:[%s905 + $0x30] sm:$0xf]
        %v919 = vld [vmem:[%s905 + $0x34] sm:$0xf]
        %v920 = vld [vmem:[%s905 + $0x38] sm:$0xf]
        %v921 = vld [vmem:[%s905 + $0x3c] sm:$0xf]
        %v938 = vunpack.c.l.b16 %v906
        %v939 = vunpack.c.l.b16 %v907
        %v940 = vunpack.c.l.b16 %v908
        %v941 = vunpack.c.l.b16 %v909
        %v942 = vunpack.c.l.b16 %v910
        %v943 = vunpack.c.l.b16 %v911
        %v944 = vunpack.c.l.b16 %v912
        %v945 = vunpack.c.l.b16 %v913
        %v946 = vunpack.c.l.b16 %v914
        %v947 = vunpack.c.l.b16 %v915
        %v948 = vunpack.c.l.b16 %v916
        %v949 = vunpack.c.l.b16 %v917
        %v950 = vunpack.c.l.b16 %v918
        %v951 = vunpack.c.l.b16 %v919
        %v952 = vunpack.c.l.b16 %v920
        %v953 = vunpack.c.l.b16 %v921
        %v954 = vpack.c.b16 %v939, %v938
        %v955 = vpack.c.b16 %v941, %v940
        %v956 = vpack.c.b16 %v943, %v942
        %v957 = vpack.c.b16 %v945, %v944
        %v958 = vpack.c.b16 %v947, %v946
        %v959 = vpack.c.b16 %v949, %v948
        %v960 = vpack.c.b16 %v951, %v950
        %v961 = vpack.c.b16 %v953, %v952
        %970 = vmatpush.bf16.msra.mxu0 %v961
        %971 = vmatpush.bf16.msra.mxu0 %v960
        %972 = vmatpush.bf16.msra.mxu0 %v959
        %973 = vmatpush.bf16.msra.mxu0 %v958
        %974 = vmatpush.bf16.msra.mxu0 %v957
        %975 = vmatpush.bf16.msra.mxu0 %v956
        %976 = vmatpush.bf16.msra.mxu0 %v955
        %977 = vmatpush.bf16.msra.mxu0 %v954
        %978 = vmatmul.bf16.gmra.mxu0 %v736
        %v979 = vpop.f32.mrf.mxu0
        %v980 = vadd.f32 0.0, %v979
        %v981 = vpop.f32.mrf.mxu0
        %v982 = vadd.f32 0.0, %v981
        %983 = vdwg.mxu0
        %v984 = vadd.f32 %v898, %v980
        %v985 = vadd.f32 %v900, %v982
        %s986 = scalar_lea.vmem %s2, %s720
        %v987 = vld [vmem:[%s986] sm:$0x1]
        %v989 = vperm.slane %v987, 0
        %v991 = vadd.f32 %v984, %v989
        %v992 = vadd.f32 %v985, %v989
        %v993 = vadd.f32 %v991, %v442
        %v994 = vadd.f32 %v992, %v443
      $region37: #{mainnet_forward.1} parent=31 // loop_footer
        %s441 = sadd.s32 1, %s437
      $region38: #{mainnet_forward.1} parent=31 // loop_footer_branch
        %436 = sbr.rel target = $region34
      $region39: #{mainnet_forward.1} parent=31 // loop_exit
        _
      %v997 = vrot.slane %v442, 7
      %v998 = vrot.slane %v443, 7
      %v999 = vsel %vm175, %v997, %v998
      %v1002 = vsel %vm175, 0.0, %v997
      %v1003 = vpack.c.bf16 %v999, %v1002
      %v1004 = vrot.slane %v442, 1
      %v1005 = vrot.slane %v443, 1
      %v1006 = vsel %vm183, %v1004, %v1005
      %v1009 = vsel %vm183, %v1005, 0.0
      %v1010 = vpack.c.bf16 %v1009, %v1006
      %v1011 = vpack.c.bf16 %v443, %v442
      %s1012 = scalar_lea.vmem %s1, 960
      %v1013 = vld [vmem:[%s1012] sm:$0xf]
      %v1014 = vld [vmem:[%s1012 + $0x4] sm:$0xf]
      %v1015 = vld [vmem:[%s1012 + $0x8] sm:$0xf]
      %v1016 = vld [vmem:[%s1012 + $0xc] sm:$0xf]
      %v1017 = vld [vmem:[%s1012 + $0x10] sm:$0xf]
      %v1018 = vld [vmem:[%s1012 + $0x14] sm:$0xf]
      %v1019 = vld [vmem:[%s1012 + $0x18] sm:$0xf]
      %v1020 = vld [vmem:[%s1012 + $0x1c] sm:$0xf]
      %v1021 = vld [vmem:[%s1012 + $0x20] sm:$0xf]
      %v1022 = vld [vmem:[%s1012 + $0x24] sm:$0xf]
      %v1023 = vld [vmem:[%s1012 + $0x28] sm:$0xf]
      %v1024 = vld [vmem:[%s1012 + $0x2c] sm:$0xf]
      %v1025 = vld [vmem:[%s1012 + $0x30] sm:$0xf]
      %v1026 = vld [vmem:[%s1012 + $0x34] sm:$0xf]
      %v1027 = vld [vmem:[%s1012 + $0x38] sm:$0xf]
      %v1028 = vld [vmem:[%s1012 + $0x3c] sm:$0xf]
      %s1029 = scalar_lea.vmem %s1, 1024
      %v1030 = vld [vmem:[%s1029] sm:$0xf]
      %v1031 = vld [vmem:[%s1029 + $0x4] sm:$0xf]
      %v1032 = vld [vmem:[%s1029 + $0x8] sm:$0xf]
      %v1033 = vld [vmem:[%s1029 + $0xc] sm:$0xf]
      %v1034 = vld [vmem:[%s1029 + $0x10] sm:$0xf]
      %v1035 = vld [vmem:[%s1029 + $0x14] sm:$0xf]
      %v1036 = vld [vmem:[%s1029 + $0x18] sm:$0xf]
      %v1037 = vld [vmem:[%s1029 + $0x1c] sm:$0xf]
      %v1038 = vld [vmem:[%s1029 + $0x20] sm:$0xf]
      %v1039 = vld [vmem:[%s1029 + $0x24] sm:$0xf]
      %v1040 = vld [vmem:[%s1029 + $0x28] sm:$0xf]
      %v1041 = vld [vmem:[%s1029 + $0x2c] sm:$0xf]
      %v1042 = vld [vmem:[%s1029 + $0x30] sm:$0xf]
      %v1043 = vld [vmem:[%s1029 + $0x34] sm:$0xf]
      %v1044 = vld [vmem:[%s1029 + $0x38] sm:$0xf]
      %v1045 = vld [vmem:[%s1029 + $0x3c] sm:$0xf]
      %v1062 = vunpack.c.l.b16 %v1030
      %v1063 = vunpack.c.l.b16 %v1031
      %v1064 = vunpack.c.l.b16 %v1032
      %v1065 = vunpack.c.l.b16 %v1033
      %v1066 = vunpack.c.l.b16 %v1034
      %v1067 = vunpack.c.l.b16 %v1035
      %v1068 = vunpack.c.l.b16 %v1036
      %v1069 = vunpack.c.l.b16 %v1037
      %v1070 = vunpack.c.l.b16 %v1038
      %v1071 = vunpack.c.l.b16 %v1039
      %v1072 = vunpack.c.l.b16 %v1040
      %v1073 = vunpack.c.l.b16 %v1041
      %v1074 = vunpack.c.l.b16 %v1042
      %v1075 = vunpack.c.l.b16 %v1043
      %v1076 = vunpack.c.l.b16 %v1044
      %v1077 = vunpack.c.l.b16 %v1045
      %v1078 = vpack.c.b16 %v1063, %v1062
      %v1079 = vpack.c.b16 %v1065, %v1064
      %v1080 = vpack.c.b16 %v1067, %v1066
      %v1081 = vpack.c.b16 %v1069, %v1068
      %v1082 = vpack.c.b16 %v1071, %v1070
      %v1083 = vpack.c.b16 %v1073, %v1072
      %v1084 = vpack.c.b16 %v1075, %v1074
      %v1085 = vpack.c.b16 %v1077, %v1076
      %1094 = vmatpush.bf16.msra.mxu0 %v1085
      %1095 = vmatpush.bf16.msra.mxu0 %v1084
      %1096 = vmatpush.bf16.msra.mxu0 %v1083
      %1097 = vmatpush.bf16.msra.mxu0 %v1082
      %1098 = vmatpush.bf16.msra.mxu0 %v1081
      %1099 = vmatpush.bf16.msra.mxu0 %v1080
      %1100 = vmatpush.bf16.msra.mxu0 %v1079
      %1101 = vmatpush.bf16.msra.mxu0 %v1078
      %1102 = vmatmul.bf16.gmra.mxu0 %v1011
      %v1103 = vpop.f32.mrf.mxu0
      %v1104 = vadd.f32 0.0, %v1103
      %v1105 = vpop.f32.mrf.mxu0
      %v1106 = vadd.f32 0.0, %v1105
      %1107 = vdwg.mxu0
      %v1124 = vunpack.c.l.b16 %v1013
      %v1125 = vunpack.c.l.b16 %v1014
      %v1126 = vunpack.c.l.b16 %v1015
      %v1127 = vunpack.c.l.b16 %v1016
      %v1128 = vunpack.c.l.b16 %v1017
      %v1129 = vunpack.c.l.b16 %v1018
      %v1130 = vunpack.c.l.b16 %v1019
      %v1131 = vunpack.c.l.b16 %v1020
      %v1132 = vunpack.c.l.b16 %v1021
      %v1133 = vunpack.c.l.b16 %v1022
      %v1134 = vunpack.c.l.b16 %v1023
      %v1135 = vunpack.c.l.b16 %v1024
      %v1136 = vunpack.c.l.b16 %v1025
      %v1137 = vunpack.c.l.b16 %v1026
      %v1138 = vunpack.c.l.b16 %v1027
      %v1139 = vunpack.c.l.b16 %v1028
      %v1140 = vpack.c.b16 %v1125, %v1124
      %v1141 = vpack.c.b16 %v1127, %v1126
      %v1142 = vpack.c.b16 %v1129, %v1128
      %v1143 = vpack.c.b16 %v1131, %v1130
      %v1144 = vpack.c.b16 %v1133, %v1132
      %v1145 = vpack.c.b16 %v1135, %v1134
      %v1146 = vpack.c.b16 %v1137, %v1136
      %v1147 = vpack.c.b16 %v1139, %v1138
      %1156 = vmatpush.bf16.msra.mxu0 %v1147
      %1157 = vmatpush.bf16.msra.mxu0 %v1146
      %1158 = vmatpush.bf16.msra.mxu0 %v1145
      %1159 = vmatpush.bf16.msra.mxu0 %v1144
      %1160 = vmatpush.bf16.msra.mxu0 %v1143
      %1161 = vmatpush.bf16.msra.mxu0 %v1142
      %1162 = vmatpush.bf16.msra.mxu0 %v1141
      %1163 = vmatpush.bf16.msra.mxu0 %v1140
      %1164 = vmatmul.bf16.gmra.mxu0 %v1003
      %v1165 = vpop.f32.mrf.mxu0
      %v1166 = vadd.f32 %v1104, %v1165
      %v1167 = vpop.f32.mrf.mxu0
      %v1168 = vadd.f32 %v1106, %v1167
      %1169 = vdwg.mxu0
      %s1170 = scalar_lea.vmem %s1, 1088
      %v1171 = vld [vmem:[%s1170] sm:$0xf]
      %v1172 = vld [vmem:[%s1170 + $0x4] sm:$0xf]
      %v1173 = vld [vmem:[%s1170 + $0x8] sm:$0xf]
      %v1174 = vld [vmem:[%s1170 + $0xc] sm:$0xf]
      %v1175 = vld [vmem:[%s1170 + $0x10] sm:$0xf]
      %v1176 = vld [vmem:[%s1170 + $0x14] sm:$0xf]
      %v1177 = vld [vmem:[%s1170 + $0x18] sm:$0xf]
      %v1178 = vld [vmem:[%s1170 + $0x1c] sm:$0xf]
      %v1179 = vld [vmem:[%s1170 + $0x20] sm:$0xf]
      %v1180 = vld [vmem:[%s1170 + $0x24] sm:$0xf]
      %v1181 = vld [vmem:[%s1170 + $0x28] sm:$0xf]
      %v1182 = vld [vmem:[%s1170 + $0x2c] sm:$0xf]
      %v1183 = vld [vmem:[%s1170 + $0x30] sm:$0xf]
      %v1184 = vld [vmem:[%s1170 + $0x34] sm:$0xf]
      %v1185 = vld [vmem:[%s1170 + $0x38] sm:$0xf]
      %v1186 = vld [vmem:[%s1170 + $0x3c] sm:$0xf]
      %v1203 = vunpack.c.l.b16 %v1171
      %v1204 = vunpack.c.l.b16 %v1172
      %v1205 = vunpack.c.l.b16 %v1173
      %v1206 = vunpack.c.l.b16 %v1174
      %v1207 = vunpack.c.l.b16 %v1175
      %v1208 = vunpack.c.l.b16 %v1176
      %v1209 = vunpack.c.l.b16 %v1177
      %v1210 = vunpack.c.l.b16 %v1178
      %v1211 = vunpack.c.l.b16 %v1179
      %v1212 = vunpack.c.l.b16 %v1180
      %v1213 = vunpack.c.l.b16 %v1181
      %v1214 = vunpack.c.l.b16 %v1182
      %v1215 = vunpack.c.l.b16 %v1183
      %v1216 = vunpack.c.l.b16 %v1184
      %v1217 = vunpack.c.l.b16 %v1185
      %v1218 = vunpack.c.l.b16 %v1186
      %v1219 = vpack.c.b16 %v1204, %v1203
      %v1220 = vpack.c.b16 %v1206, %v1205
      %v1221 = vpack.c.b16 %v1208, %v1207
      %v1222 = vpack.c.b16 %v1210, %v1209
      %v1223 = vpack.c.b16 %v1212, %v1211
      %v1224 = vpack.c.b16 %v1214, %v1213
      %v1225 = vpack.c.b16 %v1216, %v1215
      %v1226 = vpack.c.b16 %v1218, %v1217
      %1235 = vmatpush.bf16.msra.mxu0 %v1226
      %1236 = vmatpush.bf16.msra.mxu0 %v1225
      %1237 = vmatpush.bf16.msra.mxu0 %v1224
      %1238 = vmatpush.bf16.msra.mxu0 %v1223
      %1239 = vmatpush.bf16.msra.mxu0 %v1222
      %1240 = vmatpush.bf16.msra.mxu0 %v1221
      %1241 = vmatpush.bf16.msra.mxu0 %v1220
      %1242 = vmatpush.bf16.msra.mxu0 %v1219
      %1243 = vmatmul.bf16.gmra.mxu0 %v1010
      %v1244 = vpop.f32.mrf.mxu0
      %v1245 = vadd.f32 0.0, %v1244
      %v1246 = vpop.f32.mrf.mxu0
      %v1247 = vadd.f32 0.0, %v1246
      %1248 = vdwg.mxu0
      %v1249 = vadd.f32 %v1166, %v1245
      %v1250 = vadd.f32 %v1168, %v1247
      %s1251 = scalar_lea.vmem %s2, 5
      %v1252 = vld [vmem:[%s1251] sm:$0x1]
      %v1254 = vperm.slane %v1252, 0
      %v1256 = vadd.f32 %v1249, %v1254
      %v1257 = vadd.f32 %v1250, %v1254
      %v1258 = vadd.f32 %v1256, %v434
      %v1259 = vadd.f32 %v1257, %v435
      %v1262 = vrot.slane %v1258, 7
      %v1263 = vrot.slane %v1259, 7
      %v1264 = vsel %vm175, %v1262, %v1263
      %v1267 = vsel %vm175, 0.0, %v1262
      %v1268 = vpack.c.bf16 %v1264, %v1267
      %v1269 = vrot.slane %v1258, 1
      %v1270 = vrot.slane %v1259, 1
      %v1271 = vsel %vm183, %v1269, %v1270
      %v1274 = vsel %vm183, %v1270, 0.0
      %v1275 = vpack.c.bf16 %v1274, %v1271
      %v1276 = vpack.c.bf16 %v1259, %v1258
      %s1277 = scalar_lea.vmem %s1, 1152
      %v1278 = vld [vmem:[%s1277] sm:$0xf]
      %v1279 = vld [vmem:[%s1277 + $0x4] sm:$0xf]
      %v1280 = vld [vmem:[%s1277 + $0x8] sm:$0xf]
      %v1281 = vld [vmem:[%s1277 + $0xc] sm:$0xf]
      %v1282 = vld [vmem:[%s1277 + $0x10] sm:$0xf]
      %v1283 = vld [vmem:[%s1277 + $0x14] sm:$0xf]
      %v1284 = vld [vmem:[%s1277 + $0x18] sm:$0xf]
      %v1285 = vld [vmem:[%s1277 + $0x1c] sm:$0xf]
      %v1286 = vld [vmem:[%s1277 + $0x20] sm:$0xf]
      %v1287 = vld [vmem:[%s1277 + $0x24] sm:$0xf]
      %v1288 = vld [vmem:[%s1277 + $0x28] sm:$0xf]
      %v1289 = vld [vmem:[%s1277 + $0x2c] sm:$0xf]
      %v1290 = vld [vmem:[%s1277 + $0x30] sm:$0xf]
      %v1291 = vld [vmem:[%s1277 + $0x34] sm:$0xf]
      %v1292 = vld [vmem:[%s1277 + $0x38] sm:$0xf]
      %v1293 = vld [vmem:[%s1277 + $0x3c] sm:$0xf]
      %s1294 = scalar_lea.vmem %s1, 1216
      %v1295 = vld [vmem:[%s1294] sm:$0xf]
      %v1296 = vld [vmem:[%s1294 + $0x4] sm:$0xf]
      %v1297 = vld [vmem:[%s1294 + $0x8] sm:$0xf]
      %v1298 = vld [vmem:[%s1294 + $0xc] sm:$0xf]
      %v1299 = vld [vmem:[%s1294 + $0x10] sm:$0xf]
      %v1300 = vld [vmem:[%s1294 + $0x14] sm:$0xf]
      %v1301 = vld [vmem:[%s1294 + $0x18] sm:$0xf]
      %v1302 = vld [vmem:[%s1294 + $0x1c] sm:$0xf]
      %v1303 = vld [vmem:[%s1294 + $0x20] sm:$0xf]
      %v1304 = vld [vmem:[%s1294 + $0x24] sm:$0xf]
      %v1305 = vld [vmem:[%s1294 + $0x28] sm:$0xf]
      %v1306 = vld [vmem:[%s1294 + $0x2c] sm:$0xf]
      %v1307 = vld [vmem:[%s1294 + $0x30] sm:$0xf]
      %v1308 = vld [vmem:[%s1294 + $0x34] sm:$0xf]
      %v1309 = vld [vmem:[%s1294 + $0x38] sm:$0xf]
      %v1310 = vld [vmem:[%s1294 + $0x3c] sm:$0xf]
      %v1327 = vunpack.c.l.b16 %v1295
      %v1328 = vunpack.c.l.b16 %v1296
      %v1329 = vunpack.c.l.b16 %v1297
      %v1330 = vunpack.c.l.b16 %v1298
      %v1331 = vunpack.c.l.b16 %v1299
      %v1332 = vunpack.c.l.b16 %v1300
      %v1333 = vunpack.c.l.b16 %v1301
      %v1334 = vunpack.c.l.b16 %v1302
      %v1335 = vunpack.c.l.b16 %v1303
      %v1336 = vunpack.c.l.b16 %v1304
      %v1337 = vunpack.c.l.b16 %v1305
      %v1338 = vunpack.c.l.b16 %v1306
      %v1339 = vunpack.c.l.b16 %v1307
      %v1340 = vunpack.c.l.b16 %v1308
      %v1341 = vunpack.c.l.b16 %v1309
      %v1342 = vunpack.c.l.b16 %v1310
      %v1343 = vpack.c.b16 %v1328, %v1327
      %v1344 = vpack.c.b16 %v1330, %v1329
      %v1345 = vpack.c.b16 %v1332, %v1331
      %v1346 = vpack.c.b16 %v1334, %v1333
      %v1347 = vpack.c.b16 %v1336, %v1335
      %v1348 = vpack.c.b16 %v1338, %v1337
      %v1349 = vpack.c.b16 %v1340, %v1339
      %v1350 = vpack.c.b16 %v1342, %v1341
      %1359 = vmatpush.bf16.msra.mxu0 %v1350
      %1360 = vmatpush.bf16.msra.mxu0 %v1349
      %1361 = vmatpush.bf16.msra.mxu0 %v1348
      %1362 = vmatpush.bf16.msra.mxu0 %v1347
      %1363 = vmatpush.bf16.msra.mxu0 %v1346
      %1364 = vmatpush.bf16.msra.mxu0 %v1345
      %1365 = vmatpush.bf16.msra.mxu0 %v1344
      %1366 = vmatpush.bf16.msra.mxu0 %v1343
      %1367 = vmatmul.bf16.gmra.mxu0 %v1276
      %v1368 = vpop.f32.mrf.mxu0
      %v1369 = vadd.f32 0.0, %v1368
      %v1370 = vpop.f32.mrf.mxu0
      %v1371 = vadd.f32 0.0, %v1370
      %1372 = vdwg.mxu0
      %v1389 = vunpack.c.l.b16 %v1278
      %v1390 = vunpack.c.l.b16 %v1279
      %v1391 = vunpack.c.l.b16 %v1280
      %v1392 = vunpack.c.l.b16 %v1281
      %v1393 = vunpack.c.l.b16 %v1282
      %v1394 = vunpack.c.l.b16 %v1283
      %v1395 = vunpack.c.l.b16 %v1284
      %v1396 = vunpack.c.l.b16 %v1285
      %v1397 = vunpack.c.l.b16 %v1286
      %v1398 = vunpack.c.l.b16 %v1287
      %v1399 = vunpack.c.l.b16 %v1288
      %v1400 = vunpack.c.l.b16 %v1289
      %v1401 = vunpack.c.l.b16 %v1290
      %v1402 = vunpack.c.l.b16 %v1291
      %v1403 = vunpack.c.l.b16 %v1292
      %v1404 = vunpack.c.l.b16 %v1293
      %v1405 = vpack.c.b16 %v1390, %v1389
      %v1406 = vpack.c.b16 %v1392, %v1391
      %v1407 = vpack.c.b16 %v1394, %v1393
      %v1408 = vpack.c.b16 %v1396, %v1395
      %v1409 = vpack.c.b16 %v1398, %v1397
      %v1410 = vpack.c.b16 %v1400, %v1399
      %v1411 = vpack.c.b16 %v1402, %v1401
      %v1412 = vpack.c.b16 %v1404, %v1403
      %1421 = vmatpush.bf16.msra.mxu0 %v1412
      %1422 = vmatpush.bf16.msra.mxu0 %v1411
      %1423 = vmatpush.bf16.msra.mxu0 %v1410
      %1424 = vmatpush.bf16.msra.mxu0 %v1409
      %1425 = vmatpush.bf16.msra.mxu0 %v1408
      %1426 = vmatpush.bf16.msra.mxu0 %v1407
      %1427 = vmatpush.bf16.msra.mxu0 %v1406
      %1428 = vmatpush.bf16.msra.mxu0 %v1405
      %1429 = vmatmul.bf16.gmra.mxu0 %v1268
      %v1430 = vpop.f32.mrf.mxu0
      %v1431 = vadd.f32 %v1369, %v1430
      %v1432 = vpop.f32.mrf.mxu0
      %v1433 = vadd.f32 %v1371, %v1432
      %1434 = vdwg.mxu0
      %s1435 = scalar_lea.vmem %s1, 1280
      %v1436 = vld [vmem:[%s1435] sm:$0xf]
      %v1437 = vld [vmem:[%s1435 + $0x4] sm:$0xf]
      %v1438 = vld [vmem:[%s1435 + $0x8] sm:$0xf]
      %v1439 = vld [vmem:[%s1435 + $0xc] sm:$0xf]
      %v1440 = vld [vmem:[%s1435 + $0x10] sm:$0xf]
      %v1441 = vld [vmem:[%s1435 + $0x14] sm:$0xf]
      %v1442 = vld [vmem:[%s1435 + $0x18] sm:$0xf]
      %v1443 = vld [vmem:[%s1435 + $0x1c] sm:$0xf]
      %v1444 = vld [vmem:[%s1435 + $0x20] sm:$0xf]
      %v1445 = vld [vmem:[%s1435 + $0x24] sm:$0xf]
      %v1446 = vld [vmem:[%s1435 + $0x28] sm:$0xf]
      %v1447 = vld [vmem:[%s1435 + $0x2c] sm:$0xf]
      %v1448 = vld [vmem:[%s1435 + $0x30] sm:$0xf]
      %v1449 = vld [vmem:[%s1435 + $0x34] sm:$0xf]
      %v1450 = vld [vmem:[%s1435 + $0x38] sm:$0xf]
      %v1451 = vld [vmem:[%s1435 + $0x3c] sm:$0xf]
      %v1468 = vunpack.c.l.b16 %v1436
      %v1469 = vunpack.c.l.b16 %v1437
      %v1470 = vunpack.c.l.b16 %v1438
      %v1471 = vunpack.c.l.b16 %v1439
      %v1472 = vunpack.c.l.b16 %v1440
      %v1473 = vunpack.c.l.b16 %v1441
      %v1474 = vunpack.c.l.b16 %v1442
      %v1475 = vunpack.c.l.b16 %v1443
      %v1476 = vunpack.c.l.b16 %v1444
      %v1477 = vunpack.c.l.b16 %v1445
      %v1478 = vunpack.c.l.b16 %v1446
      %v1479 = vunpack.c.l.b16 %v1447
      %v1480 = vunpack.c.l.b16 %v1448
      %v1481 = vunpack.c.l.b16 %v1449
      %v1482 = vunpack.c.l.b16 %v1450
      %v1483 = vunpack.c.l.b16 %v1451
      %v1484 = vpack.c.b16 %v1469, %v1468
      %v1485 = vpack.c.b16 %v1471, %v1470
      %v1486 = vpack.c.b16 %v1473, %v1472
      %v1487 = vpack.c.b16 %v1475, %v1474
      %v1488 = vpack.c.b16 %v1477, %v1476
      %v1489 = vpack.c.b16 %v1479, %v1478
      %v1490 = vpack.c.b16 %v1481, %v1480
      %v1491 = vpack.c.b16 %v1483, %v1482
      %1500 = vmatpush.bf16.msra.mxu0 %v1491
      %1501 = vmatpush.bf16.msra.mxu0 %v1490
      %1502 = vmatpush.bf16.msra.mxu0 %v1489
      %1503 = vmatpush.bf16.msra.mxu0 %v1488
      %1504 = vmatpush.bf16.msra.mxu0 %v1487
      %1505 = vmatpush.bf16.msra.mxu0 %v1486
      %1506 = vmatpush.bf16.msra.mxu0 %v1485
      %1507 = vmatpush.bf16.msra.mxu0 %v1484
      %1508 = vmatmul.bf16.gmra.mxu0 %v1275
      %v1509 = vpop.f32.mrf.mxu0
      %v1510 = vadd.f32 0.0, %v1509
      %v1511 = vpop.f32.mrf.mxu0
      %v1512 = vadd.f32 0.0, %v1511
      %1513 = vdwg.mxu0
      %v1514 = vadd.f32 %v1431, %v1510
      %v1515 = vadd.f32 %v1433, %v1512
      %s1516 = scalar_lea.vmem %s2, 6
      %v1517 = vld [vmem:[%s1516] sm:$0x1]
      %v1519 = vperm.slane %v1517, 0
      %v1521 = vadd.f32 %v1514, %v1519
      %v1522 = vadd.f32 %v1515, %v1519
      %1523 = vst [vmem:[%s170] sm:$0xff] %v1521
      %1524 = vst [vmem:[%s170 + $0x8] sm:$0xff] %v1522
      %p1525 = scmp.lt.s32.totalorder %s14, 1
      %s1526 = scalar_select %p1525, %s14, 1
      %s1527 = smul.addr %s1526, 2
      %s1528 = smul.addr %s1527, 8
      %s1529 = scalar_lea.vmem %s3, %s1528
      // Predicated region
      $region40: #{mainnet_forward.1} parent=31 // pred_check
        %p1530 = pneg %p100
      $region41: #{mainnet_forward.1} parent=31 // pred_check_branch
        %1532 = sbr.rel (%p1530) target = $region43
      $region42: #{mainnet_forward.1} parent=31 // pred_region
        _
      $region43: #{mainnet_forward.1} parent=31 // pred_fallthru
        _
    $region32: #{mainnet_forward.1} parent=5 // pred_fallthru
      _
    %p1533 = scmp.le.s32.totalorder 2, %s9
    // Predicated region
    $region44: #{mainnet_forward.1} parent=5 // pred_check
      %p1534 = pneg %p1533
    $region45: #{mainnet_forward.1} parent=5 // pred_check_branch
      %1536 = sbr.rel (%p1534) target = $region47
    $region46: #{mainnet_forward.1} parent=5 // pred_region
      %s1537 = ssub.s32 %s9, 2
      // Predicated region
      $region48: #{mainnet_forward.1} parent=46 // pred_check
        %p1538 = pneg %p106
      $region49: #{mainnet_forward.1} parent=46 // pred_check_branch
        %1540 = sbr.rel (%p1538) target = $region51
      $region50: #{mainnet_forward.1} parent=46 // pred_region
        %p1541 = scmp.lt.s32.totalorder %s15, 1
        %s1542 = scalar_select %p1541, %s15, 1
        %s1543 = smul.addr %s1542, 2
        %s1544 = smul.addr %s1543, 8
        %s1545 = scalar_lea.vmem %s3, %s1544
      $region51: #{mainnet_forward.1} parent=46 // pred_fallthru
        _
    $region47: #{mainnet_forward.1} parent=5 // pred_fallthru
      _
  $region6: #{mainnet_forward.1} parent=0 // loop_footer
    %s13 = sadd.s32 1, %s9
  $region7: #{mainnet_forward.1} parent=0 // loop_footer_branch
    %8 = sbr.rel target = $region3
  $region8: #{mainnet_forward.1} parent=0 // loop_exit
    _

</llo_original>
